<compile_context>
chip_gen: v6e
topology: v6e:2x2x1
jax: 0.10.0
libtpu: 0.0.40
codegen_flags: <defaults>
</compile_context>

<pallas_src>
import jax
import jax.numpy as jnp
from jax.experimental import pallas as pl
from jax.experimental.pallas import tpu as pltpu
from jax.scipy.linalg import block_diag

TRANSFORMER_DIM = 32            # C (divisible by 8)
NUM_MULTIMASK = 3
NUM_MASK_TOKENS = NUM_MULTIMASK + 1
IOU_HEAD_HIDDEN = 64            # toy config (module default is 256)
H = W = 8
B = 2
N_SPARSE = 4

_SQRT_2_OVER_PI = 0.7978845608028654
_SQRT_HALF = 0.7071067811865476


def _gelu_tanh(x):
    # tanh-approx GELU -> EUP slot; ~1e-3 deviation from exact nn.GELU.
    return 0.5 * x * (1.0 + jnp.tanh(_SQRT_2_OVER_PI * (x + 0.044715 * x * x * x)))


def _gelu_exact(x):
    # Exact GELU (PyTorch nn.GELU default) — used by the pure-JAX reference.
    return 0.5 * x * (1.0 + jax.lax.erf(x * _SQRT_HALF))


# ---------------------------------------------------------------------------
# Fused decoder-head kernel: one invocation, batch folded into lanes.
# ---------------------------------------------------------------------------
def decoder_kernel(src_ref, tok_ref,
                   w1_ref, b1_ref, lnw_ref, lnb_ref, w2_ref, b2_ref,
                   w0f_ref, b0f_ref, w1f_ref, b1f_ref, w2f_ref, b2f_ref,
                   masks_ref, iou_ref, ups_ref):
    f32 = jnp.float32
    bsz, n_tok, _ = masks_ref.shape
    hw = src_ref.shape[0] // bsz             # pixels per batch element (64)
    c4 = w1_ref.shape[0] // 4                # deconv-1 out channels (8)
    c8 = ups_ref.shape[1]                    # deconv-2 out channels (4)
    n_tap2 = w2_ref.shape[0] // c8           # 16 combined (p,q) taps
    n_hyper = n_tok * c8                     # 16 hypernet outputs per batch

    # ---- token path: 4 hypernet MLPs + IoU head as 3 block-diagonal matmuls
    x = tok_ref[...]                                                   # (B, 160)
    x = jnp.maximum(jnp.dot(x, w0f_ref[...], preferred_element_type=f32)
                    + b0f_ref[...], 0.0)
    x = jnp.maximum(jnp.dot(x, w1f_ref[...], preferred_element_type=f32)
                    + b1f_ref[...], 0.0)
    tok_out = jnp.dot(x, w2f_ref[...], preferred_element_type=f32) + b2f_ref[...]
    iou_ref[...] = tok_out[:, n_hyper:n_hyper + n_tok]                 # (B, 4)

    # ---- output_upscaling: ConvT(2,2,s2) -> LayerNorm2d -> GELU -> ConvT -> GELU
    # deconv-1: all 4 (di,dj) taps in ONE matmul, contracting over C against
    # the untransposed (B*HW, C) operand (no wrapper transpose).
    y1 = jax.lax.dot_general(w1_ref[...], src_ref[...],
                             dimension_numbers=(((1,), (1,)), ((), ())),
                             preferred_element_type=f32)               # (4*C4, B*HW)
    y1 = y1.reshape(4, c4, bsz * hw) + b1_ref[...]
    mu = jnp.mean(y1, axis=1, keepdims=True)                           # LayerNorm2d
    var = jnp.mean((y1 - mu) ** 2, axis=1, keepdims=True)
    y1 = (y1 - mu) * jax.lax.rsqrt(var + 1e-6)
    y1 = _gelu_tanh(y1 * lnw_ref[...] + lnb_ref[...])
    y1 = y1.reshape(4 * c4, bsz * hw)

    # deconv-2: all 16 (p,q) taps in ONE block matmul.
    y2 = jnp.dot(w2_ref[...], y1, preferred_element_type=f32) + b2_ref[...]
    y2 = _gelu_tanh(y2)                                                # (64, B*HW)

    # scatter the (p,q) sublane groups into the lane axis of the per-batch
    # upscaled embedding: ups[b, c8, (p*4+q)*HW + pix]
    for k in range(n_tap2):
        blk = y2[k * c8:(k + 1) * c8, :]                               # (C8, B*HW)
        for b in range(bsz):
            ups_ref[b, :, k * hw:(k + 1) * hw] = blk[:, b * hw:(b + 1) * hw]

    # ---- masks = hyper_in @ upscaled  (lane-dense (n_tok, 1024) stores)
    for b in range(bsz):
        hyper_b = jnp.concatenate(
            [tok_out[b:b + 1, t * c8:(t + 1) * c8] for t in range(n_tok)],
            axis=0)                                                    # (n_tok, C8)
        masks_ref[b] = jnp.dot(hyper_b, ups_ref[b], preferred_element_type=f32)


def decoder_call(src2, x_tok, kp):
    bsz = x_tok.shape[0]
    hw = src2.shape[0] // bsz
    c8 = TRANSFORMER_DIM // 8
    p_out = 16 * hw

    weights = [kp[n] for n in ('w1_taps', 'b1', 'lnw', 'lnb', 'w2_big', 'b2_big',
                               'w0f', 'b0f', 'w1f', 'b1f', 'w2f', 'b2f')]
    out_shape = (jax.ShapeDtypeStruct((bsz, NUM_MASK_TOKENS, p_out), jnp.float32),
                 jax.ShapeDtypeStruct((bsz, NUM_MASK_TOKENS), jnp.float32))
    # No grid: everything fits in VMEM (~0.4 MiB) and the whole decoder head
    # runs in a single kernel step on one TensorCore.
    return pl.pallas_call(
        decoder_kernel,
        out_shape=out_shape,
        scratch_shapes=[pltpu.VMEM((bsz, c8, p_out), jnp.float32)],
    )(src2, x_tok, *weights)


# ---------------------------------------------------------------------------
# Transformer stand-in (plain JAX glue).
# TODO(synk): `transformer` is an injected nn.Module dependency of MaskDecoder
# (not defined by the module itself); a minimal deterministic two-way
# cross-attention stand-in with the correct (hs, src) interface is used here.
# ---------------------------------------------------------------------------
def toy_transformer(p, src, pos, tokens):
    C = tokens.shape[-1]
    scale = 1.0 / jnp.sqrt(jnp.float32(C))
    q = tokens @ p['wq']
    k = (src + pos) @ p['wk']
    v = src @ p['wv']
    attn = jax.nn.softmax(jnp.einsum('btc,bpc->btp', q, k) * scale, axis=-1)
    hs = tokens + jnp.einsum('btp,bpc->btc', attn, v)
    q2 = (src + pos) @ p['wq2']
    k2 = hs @ p['wk2']
    v2 = hs @ p['wv2']
    attn2 = jax.nn.softmax(jnp.einsum('bpc,btc->bpt', q2, k2) * scale, axis=-1)
    src_out = src + jnp.einsum('bpt,btc->bpc', attn2, v2)
    return hs, src_out


# ---------------------------------------------------------------------------
# Parameters
# ---------------------------------------------------------------------------
def init_params(key):
    C = TRANSFORMER_DIM
    C4, C8 = C // 4, C // 8
    ks = iter(jax.random.split(key, 32))
    nrm = lambda shape, s=0.1: jax.random.normal(next(ks), shape, jnp.float32) * s
    return {
        'iou_token': nrm((1, C)),
        'mask_tokens': nrm((NUM_MASK_TOKENS, C)),
        'transformer': {n: nrm((C, C)) for n in ('wq', 'wk', 'wv', 'wq2', 'wk2', 'wv2')},
        'up': {
            # ConvTranspose2d weights in PyTorch layout [C_in, C_out, kH, kW]
            'w1': nrm((C, C4, 2, 2)),
            'b1': nrm((C4,)),
            'ln_w': 1.0 + nrm((C4,)),
            'ln_b': nrm((C4,)),
            'w2': nrm((C4, C8, 2, 2)),
            'b2': nrm((C8,)),
        },
        'hyper': {
            # Linear weights stored as (in, out): y = x @ w + b
            'w0': nrm((NUM_MASK_TOKENS, C, C)), 'b0': nrm((NUM_MASK_TOKENS, C)),
            'w1': nrm((NUM_MASK_TOKENS, C, C)), 'b1': nrm((NUM_MASK_TOKENS, C)),
            'w2': nrm((NUM_MASK_TOKENS, C, C8)), 'b2': nrm((NUM_MASK_TOKENS, C8)),
        },
        'iou_head': {
            'w0': nrm((C, IOU_HEAD_HIDDEN)), 'b0': nrm((IOU_HEAD_HIDDEN,)),
            'w1': nrm((IOU_HEAD_HIDDEN, IOU_HEAD_HIDDEN)), 'b1': nrm((IOU_HEAD_HIDDEN,)),
            'w2': nrm((IOU_HEAD_HIDDEN, NUM_MASK_TOKENS)), 'b2': nrm((NUM_MASK_TOKENS,)),
        },
    }


def prepare_kernel_params(params):
    """Repack weights into the kernel's stacked / block-diagonal layouts (once)."""
    up, hp, ip = params['up'], params['hyper'], params['iou_head']
    C, C4 = up['w1'].shape[0], up['w1'].shape[1]
    C8 = up['w2'].shape[1]
    n_tok = hp['w0'].shape[0]

    # deconv-1: the 4 (di,dj) taps stacked on rows -> (4*C4, C), row (p, c4)
    w1_taps = jnp.transpose(up['w1'], (2, 3, 1, 0)).reshape(4 * C4, C)
    # deconv-2: block matrix (16*C8, 4*C4): row (p, q, c8), col (p, c4)
    w2_tap = jnp.transpose(up['w2'], (2, 3, 1, 0)).reshape(4 * C8, C4)   # rows (q, c8)
    w2_big = block_diag(*([w2_tap] * 4))                                 # (64, 32)
    b2_big = jnp.tile(up['b2'], 16).reshape(16 * C8, 1)

    # token-side MLPs: block-diagonal over (4 mask tokens, IoU head)
    w0f = block_diag(*[hp['w0'][t] for t in range(n_tok)], ip['w0'])     # (160, 192)
    w1f = block_diag(*[hp['w1'][t] for t in range(n_tok)], ip['w1'])     # (192, 192)
    w2f = block_diag(*[hp['w2'][t] for t in range(n_tok)], ip['w2'])     # (192, 20)
    b0f = jnp.concatenate([hp['b0'].reshape(-1), ip['b0']]).reshape(1, -1)
    b1f = jnp.concatenate([hp['b1'].reshape(-1), ip['b1']]).reshape(1, -1)
    b2f = jnp.concatenate([hp['b2'].reshape(-1), ip['b2']]).reshape(1, -1)

    return {
        'w1_taps': w1_taps,
        'b1': up['b1'].reshape(1, C4, 1),
        'lnw': up['ln_w'].reshape(1, C4, 1),
        'lnb': up['ln_b'].reshape(1, C4, 1),
        'w2_big': w2_big, 'b2_big': b2_big,
        'w0f': w0f, 'b0f': b0f, 'w1f': w1f, 'b1f': b1f, 'w2f': w2f, 'b2f': b2f,
    }


# ---------------------------------------------------------------------------
# Forward pass
# ---------------------------------------------------------------------------
def decoder_trunk(params, image_embeddings, image_pe, sparse, dense):
    bsz = sparse.shape[0]
    output_tokens = jnp.concatenate([params['iou_token'], params['mask_tokens']], axis=0)
    output_tokens = jnp.broadcast_to(output_tokens[None], (bsz,) + output_tokens.shape)
    tokens = jnp.concatenate([output_tokens, sparse], axis=1)

    src = jnp.repeat(image_embeddings, bsz, axis=0) + dense
    pos_src = jnp.repeat(image_pe, bsz, axis=0)
    b, c, h, w = src.shape

    src_flat = jnp.transpose(src.reshape(b, c, h * w), (0, 2, 1))      # (B, HW, C)
    pos_flat = jnp.transpose(pos_src.reshape(b, c, h * w), (0, 2, 1))

    hs, src_seq = toy_transformer(params['transformer'], src_flat, pos_flat, tokens)
    iou_token_out = hs[:, 0, :]
    mask_tokens_out = hs[:, 1:1 + NUM_MASK_TOKENS, :]
    return src_seq, mask_tokens_out, iou_token_out, (b, c, h, w)


def mask_decoder_forward(params, kparams, image_embeddings, image_pe,
                         sparse, dense, multimask_output):
    src_seq, mask_tokens_out, iou_token_out, (b, c, h, w) = decoder_trunk(
        params, image_embeddings, image_pe, sparse, dense)

    # No transpose: the kernel contracts over C against the natural (B*HW, C)
    # layout; the token path gets one (4*C + C)-wide row per batch element.
    src2 = src_seq.reshape(b * h * w, c)                               # (128, 32)
    x_tok = jnp.concatenate([mask_tokens_out.reshape(b, -1), iou_token_out], axis=1)

    masks_flat, iou_pred = decoder_call(src2, x_tok, kparams)

    # kernel lane order (di, dj, ei, ej, i, j) -> spatial (4i+2di+ei, 4j+2dj+ej)
    m = masks_flat.reshape(b, NUM_MASK_TOKENS, 2, 2, 2, 2, h, w)
    masks = jnp.transpose(m, (0, 1, 6, 2, 4, 7, 3, 5)).reshape(
        b, NUM_MASK_TOKENS, 4 * h, 4 * w)

    if multimask_output:
        masks = masks[:, 1:, :, :]
        iou_pred = iou_pred[:, 1:]
    else:
        masks = masks[:, 0:1, :, :]
        iou_pred = iou_pred[:, 0:1]
    return masks, iou_pred


# ---------------------------------------------------------------------------
# Pure-JAX reference (mirrors the PyTorch module) for a numerical check
# ---------------------------------------------------------------------------
def reference_heads(params, src_seq, mask_tokens_out, iou_token_out, h, w):
    up, hp, ip = params['up'], params['hyper'], params['iou_head']
    b, _, c = src_seq.shape
    C4, C8 = up['w1'].shape[1], up['w2'].shape[1]
    n_tok = hp['w0'].shape[0]
    hi = jax.lax.Precision.HIGHEST

    src = jnp.transpose(src_seq, (0, 2, 1)).reshape(b, c, h, w)
    # ConvTranspose2d(C, C/4, k=2, s=2)
    y = jnp.einsum('bcij,codk->boidjk', src, up['w1'], precision=hi)
    y = y.reshape(b, C4, 2 * h, 2 * w) + up['b1'][None, :, None, None]
    # LayerNorm2d
    mu = y.mean(axis=1, keepdims=True)
    var = ((y - mu) ** 2).mean(axis=1, keepdims=True)
    y = (y - mu) / jnp.sqrt(var + 1e-6)
    y = y * up['ln_w'][None, :, None, None] + up['ln_b'][None, :, None, None]
    y = _gelu_exact(y)
    # ConvTranspose2d(C/4, C/8, k=2, s=2)
    y = jnp.einsum('bcij,codk->boidjk', y, up['w2'], precision=hi)
    y = y.reshape(b, C8, 4 * h, 4 * w) + up['b2'][None, :, None, None]
    ups = _gelu_exact(y)

    outs = []
    for t in range(n_tok):
        x = mask_tokens_out[:, t, :]
        x = jax.nn.relu(jnp.dot(x, hp['w0'][t], precision=hi) + hp['b0'][t])
        x = jax.nn.relu(jnp.dot(x, hp['w1'][t], precision=hi) + hp['b1'][t])
        x = jnp.dot(x, hp['w2'][t], precision=hi) + hp['b2'][t]
        outs.append(x)
    hyper_in = jnp.stack(outs, axis=1)                                 # (B, n_tok, C8)

    masks = jnp.einsum('btc,bcp->btp', hyper_in,
                       ups.reshape(b, C8, 16 * h * w), precision=hi)
    masks = masks.reshape(b, n_tok, 4 * h, 4 * w)

    x = iou_token_out
    x = jax.nn.relu(jnp.dot(x, ip['w0'], precision=hi) + ip['b0'])
    x = jax.nn.relu(jnp.dot(x, ip['w1'], precision=hi) + ip['b1'])
    iou = jnp.dot(x, ip['w2'], precision=hi) + ip['b2']
    return masks, iou


def mask_decoder_reference(params, image_embeddings, image_pe, sparse, dense,
                           multimask_output):
    src_seq, mask_tokens_out, iou_token_out, (b, c, h, w) = decoder_trunk(
        params, image_embeddings, image_pe, sparse, dense)
    masks, iou_pred = reference_heads(params, src_seq, mask_tokens_out, iou_token_out, h, w)
    if multimask_output:
        return masks[:, 1:, :, :], iou_pred[:, 1:]
    return masks[:, 0:1, :, :], iou_pred[:, 0:1]


if __name__ == "__main__":
    key = jax.random.PRNGKey(0)
    kp_, k1, k2, k3, k4 = jax.random.split(key, 5)
    params = init_params(kp_)
    kparams = prepare_kernel_params(params)

    image_embeddings = jax.random.normal(k1, (1, TRANSFORMER_DIM, H, W), jnp.float32)
    image_pe = jax.random.normal(k2, (1, TRANSFORMER_DIM, H, W), jnp.float32)
    sparse = jax.random.normal(k3, (B, N_SPARSE, TRANSFORMER_DIM), jnp.float32)
    dense = jax.random.normal(k4, (B, TRANSFORMER_DIM, H, W), jnp.float32)

    fwd = jax.jit(mask_decoder_forward, static_argnames=('multimask_output',))
    masks, iou_pred = fwd(params, kparams, image_embeddings, image_pe,
                          sparse, dense, multimask_output=True)
    masks, iou_pred = jax.block_until_ready((masks, iou_pred))

    assert masks.shape == (B, NUM_MULTIMASK, 4 * H, 4 * W), masks.shape
    assert iou_pred.shape == (B, NUM_MULTIMASK), iou_pred.shape

    # Numerical check against the pure-JAX reference of the same module.
    # masks use tanh-approx GELU in the kernel (exact erf in the reference):
    # ~1e-3 relative deviation, so masks get 2e-2; the IoU path has no GELU
    # and gets a tighter bound.
    masks_r, iou_r = mask_decoder_reference(params, image_embeddings, image_pe,
                                            sparse, dense, multimask_output=True)
    m_err = float(jnp.max(jnp.abs(masks - masks_r)) / (jnp.max(jnp.abs(masks_r)) + 1e-8))
    i_err = float(jnp.max(jnp.abs(iou_pred - iou_r)) / (jnp.max(jnp.abs(iou_r)) + 1e-8))
    assert m_err < 2e-2, m_err
    assert i_err < 1e-2, i_err

    print("KERNEL_OK")
</pallas_src>

<mosaic_0001>
module attributes {stable_mosaic.version = 11 : i64} {
  func.func @decoder_kernel(%arg0: memref<128x32xf32, #tpu.memory_space<vmem>>, %arg1: memref<2x160xf32, #tpu.memory_space<vmem>>, %arg2: memref<32x32xf32, #tpu.memory_space<vmem>>, %arg3: memref<1x8x1xf32, #tpu.memory_space<vmem>>, %arg4: memref<1x8x1xf32, #tpu.memory_space<vmem>>, %arg5: memref<1x8x1xf32, #tpu.memory_space<vmem>>, %arg6: memref<64x32xf32, #tpu.memory_space<vmem>>, %arg7: memref<64x1xf32, #tpu.memory_space<vmem>>, %arg8: memref<160x192xf32, #tpu.memory_space<vmem>>, %arg9: memref<1x192xf32, #tpu.memory_space<vmem>>, %arg10: memref<192x192xf32, #tpu.memory_space<vmem>>, %arg11: memref<1x192xf32, #tpu.memory_space<vmem>>, %arg12: memref<192x20xf32, #tpu.memory_space<vmem>>, %arg13: memref<1x20xf32, #tpu.memory_space<vmem>>, %arg14: memref<2x4x1024xf32, #tpu.memory_space<vmem>>, %arg15: memref<2x4xf32, #tpu.memory_space<vmem>>, %arg16: memref<2x4x1024xf32, #tpu.memory_space<vmem>>) attributes {dimension_semantics = [], scalar_prefetch = 0 : i64, scratch_operands = 1 : i64, tpu.core_type = #tpu.core_type<tc>} {
    %c0 = arith.constant 0 : index
    %c0_0 = arith.constant 0 : index
    %0 = vector.load %arg1[%c0, %c0_0] : memref<2x160xf32, #tpu.memory_space<vmem>>, vector<2x160xf32>
    %c0_1 = arith.constant 0 : index
    %c0_2 = arith.constant 0 : index
    %1 = vector.load %arg8[%c0_1, %c0_2] : memref<160x192xf32, #tpu.memory_space<vmem>>, vector<160x192xf32>
    %cst = arith.constant dense<0.000000e+00> : vector<2x192xf32>
    %2 = tpu.matmul %0, %1, %cst {dimension_numbers = #tpu.dot_dimension_numbers<[1], [0], [0], [1], [0, 0, 1, 1], [], []>} : vector<2x160xf32>, vector<160x192xf32>, vector<2x192xf32> -> vector<2x192xf32>
    %c0_3 = arith.constant 0 : index
    %c0_4 = arith.constant 0 : index
    %3 = vector.load %arg9[%c0_3, %c0_4] : memref<1x192xf32, #tpu.memory_space<vmem>>, vector<1x192xf32>
    %4 = vector.broadcast %3 : vector<1x192xf32> to vector<2x192xf32>
    %5 = arith.addf %2, %4 : vector<2x192xf32>
    %cst_5 = arith.constant 0.000000e+00 : f32
    %6 = vector.broadcast %cst_5 : f32 to vector<2x192xf32>
    %7 = arith.maximumf %5, %6 : vector<2x192xf32>
    %c0_6 = arith.constant 0 : index
    %c0_7 = arith.constant 0 : index
    %8 = vector.load %arg10[%c0_6, %c0_7] : memref<192x192xf32, #tpu.memory_space<vmem>>, vector<192x192xf32>
    %cst_8 = arith.constant dense<0.000000e+00> : vector<2x192xf32>
    %9 = tpu.matmul %7, %8, %cst_8 {dimension_numbers = #tpu.dot_dimension_numbers<[1], [0], [0], [1], [0, 0, 1, 1], [], []>} : vector<2x192xf32>, vector<192x192xf32>, vector<2x192xf32> -> vector<2x192xf32>
    %c0_9 = arith.constant 0 : index
    %c0_10 = arith.constant 0 : index
    %10 = vector.load %arg11[%c0_9, %c0_10] : memref<1x192xf32, #tpu.memory_space<vmem>>, vector<1x192xf32>
    %11 = vector.broadcast %10 : vector<1x192xf32> to vector<2x192xf32>
    %12 = arith.addf %9, %11 : vector<2x192xf32>
    %cst_11 = arith.constant 0.000000e+00 : f32
    %13 = vector.broadcast %cst_11 : f32 to vector<2x192xf32>
    %14 = arith.maximumf %12, %13 : vector<2x192xf32>
    %c0_12 = arith.constant 0 : index
    %c0_13 = arith.constant 0 : index
    %15 = vector.load %arg12[%c0_12, %c0_13] : memref<192x20xf32, #tpu.memory_space<vmem>>, vector<192x20xf32>
    %cst_14 = arith.constant dense<0.000000e+00> : vector<2x20xf32>
    %16 = tpu.matmul %14, %15, %cst_14 {dimension_numbers = #tpu.dot_dimension_numbers<[1], [0], [0], [1], [0, 0, 1, 1], [], []>} : vector<2x192xf32>, vector<192x20xf32>, vector<2x20xf32> -> vector<2x20xf32>
    %c0_15 = arith.constant 0 : index
    %c0_16 = arith.constant 0 : index
    %17 = vector.load %arg13[%c0_15, %c0_16] : memref<1x20xf32, #tpu.memory_space<vmem>>, vector<1x20xf32>
    %18 = vector.broadcast %17 : vector<1x20xf32> to vector<2x20xf32>
    %19 = arith.addf %16, %18 : vector<2x20xf32>
    %20 = vector.extract_strided_slice %19 {offsets = [0, 16], sizes = [2, 4], strides = [1, 1]} : vector<2x20xf32> to vector<2x4xf32>
    %c0_17 = arith.constant 0 : index
    %c0_18 = arith.constant 0 : index
    %21 = vector.load %arg15[%c0_17, %c0_18] : memref<2x4xf32, #tpu.memory_space<vmem>>, vector<2x4xf32>
    tpu.vector_store %arg15[%c0_17, %c0_18], %20 {strides = array<i32>} : memref<2x4xf32, #tpu.memory_space<vmem>>, vector<2x4xf32>,
    %c0_19 = arith.constant 0 : index
    %c0_20 = arith.constant 0 : index
    %22 = vector.load %arg2[%c0_19, %c0_20] : memref<32x32xf32, #tpu.memory_space<vmem>>, vector<32x32xf32>
    %c0_21 = arith.constant 0 : index
    %c0_22 = arith.constant 0 : index
    %23 = vector.load %arg0[%c0_21, %c0_22] : memref<128x32xf32, #tpu.memory_space<vmem>>, vector<128x32xf32>
    %cst_23 = arith.constant dense<0.000000e+00> : vector<32x128xf32>
    %24 = tpu.matmul %22, %23, %cst_23 {dimension_numbers = #tpu.dot_dimension_numbers<[1], [1], [0], [0], [0, 0, 1, 0], [], []>} : vector<32x32xf32>, vector<128x32xf32>, vector<32x128xf32> -> vector<32x128xf32>
    %25 = vector.shape_cast %24 : vector<32x128xf32> to vector<4x8x128xf32>
    %c0_24 = arith.constant 0 : index
    %c0_25 = arith.constant 0 : index
    %c0_26 = arith.constant 0 : index
    %26 = vector.load %arg3[%c0_24, %c0_25, %c0_26] : memref<1x8x1xf32, #tpu.memory_space<vmem>>, vector<1x8x1xf32>
    %27 = vector.broadcast %26 : vector<1x8x1xf32> to vector<4x8x128xf32>
    %28 = arith.addf %25, %27 : vector<4x8x128xf32>
    %cst_27 = arith.constant dense<0.000000e+00> : vector<4x128xf32>
    %29 = vector.multi_reduction <add>, %28, %cst_27 [1] : vector<4x8x128xf32> to vector<4x128xf32>
    %30 = vector.shape_cast %29 : vector<4x128xf32> to vector<4x1x128xf32>
    %cst_28 = arith.constant 8.000000e+00 : f32
    %31 = vector.broadcast %cst_28 : f32 to vector<4x1x128xf32>
    %32 = arith.divf %30, %31 : vector<4x1x128xf32>
    %33 = vector.broadcast %32 : vector<4x1x128xf32> to vector<4x8x128xf32>
    %34 = arith.subf %28, %33 : vector<4x8x128xf32>
    %35 = arith.mulf %34, %34 : vector<4x8x128xf32>
    %cst_29 = arith.constant dense<0.000000e+00> : vector<4x128xf32>
    %36 = vector.multi_reduction <add>, %35, %cst_29 [1] : vector<4x8x128xf32> to vector<4x128xf32>
    %37 = vector.shape_cast %36 : vector<4x128xf32> to vector<4x1x128xf32>
    %cst_30 = arith.constant 8.000000e+00 : f32
    %38 = vector.broadcast %cst_30 : f32 to vector<4x1x128xf32>
    %39 = arith.divf %37, %38 : vector<4x1x128xf32>
    %40 = vector.broadcast %32 : vector<4x1x128xf32> to vector<4x8x128xf32>
    %41 = arith.subf %28, %40 : vector<4x8x128xf32>
    %cst_31 = arith.constant 9.99999997E-7 : f32
    %42 = vector.broadcast %cst_31 : f32 to vector<4x1x128xf32>
    %43 = arith.addf %39, %42 : vector<4x1x128xf32>
    %44 = math.rsqrt %43 : vector<4x1x128xf32>
    %45 = vector.broadcast %44 : vector<4x1x128xf32> to vector<4x8x128xf32>
    %46 = arith.mulf %41, %45 : vector<4x8x128xf32>
    %c0_32 = arith.constant 0 : index
    %c0_33 = arith.constant 0 : index
    %c0_34 = arith.constant 0 : index
    %47 = vector.load %arg4[%c0_32, %c0_33, %c0_34] : memref<1x8x1xf32, #tpu.memory_space<vmem>>, vector<1x8x1xf32>
    %48 = vector.broadcast %47 : vector<1x8x1xf32> to vector<4x8x128xf32>
    %49 = arith.mulf %46, %48 : vector<4x8x128xf32>
    %c0_35 = arith.constant 0 : index
    %c0_36 = arith.constant 0 : index
    %c0_37 = arith.constant 0 : index
    %50 = vector.load %arg5[%c0_35, %c0_36, %c0_37] : memref<1x8x1xf32, #tpu.memory_space<vmem>>, vector<1x8x1xf32>
    %51 = vector.broadcast %50 : vector<1x8x1xf32> to vector<4x8x128xf32>
    %52 = arith.addf %49, %51 : vector<4x8x128xf32>
    %cst_38 = arith.constant 5.000000e-01 : f32
    %53 = vector.broadcast %cst_38 : f32 to vector<4x8x128xf32>
    %54 = arith.mulf %53, %52 : vector<4x8x128xf32>
    %cst_39 = arith.constant 4.471500e-02 : f32
    %55 = vector.broadcast %cst_39 : f32 to vector<4x8x128xf32>
    %56 = arith.mulf %55, %52 : vector<4x8x128xf32>
    %57 = arith.mulf %56, %52 : vector<4x8x128xf32>
    %58 = arith.mulf %57, %52 : vector<4x8x128xf32>
    %59 = arith.addf %52, %58 : vector<4x8x128xf32>
    %cst_40 = arith.constant 0.797884583 : f32
    %60 = vector.broadcast %cst_40 : f32 to vector<4x8x128xf32>
    %61 = arith.mulf %60, %59 : vector<4x8x128xf32>
    %62 = math.tanh %61 : vector<4x8x128xf32>
    %cst_41 = arith.constant 1.000000e+00 : f32
    %63 = vector.broadcast %cst_41 : f32 to vector<4x8x128xf32>
    %64 = arith.addf %63, %62 : vector<4x8x128xf32>
    %65 = arith.mulf %54, %64 : vector<4x8x128xf32>
    %66 = vector.shape_cast %65 : vector<4x8x128xf32> to vector<32x128xf32>
    %c0_42 = arith.constant 0 : index
    %c0_43 = arith.constant 0 : index
    %67 = vector.load %arg6[%c0_42, %c0_43] : memref<64x32xf32, #tpu.memory_space<vmem>>, vector<64x32xf32>
    %cst_44 = arith.constant dense<0.000000e+00> : vector<64x128xf32>
    %68 = tpu.matmul %67, %66, %cst_44 {dimension_numbers = #tpu.dot_dimension_numbers<[1], [0], [0], [1], [0, 0, 1, 1], [], []>} : vector<64x32xf32>, vector<32x128xf32>, vector<64x128xf32> -> vector<64x128xf32>
    %c0_45 = arith.constant 0 : index
    %c0_46 = arith.constant 0 : index
    %69 = vector.load %arg7[%c0_45, %c0_46] : memref<64x1xf32, #tpu.memory_space<vmem>>, vector<64x1xf32>
    %70 = vector.broadcast %69 : vector<64x1xf32> to vector<64x128xf32>
    %71 = arith.addf %68, %70 : vector<64x128xf32>
    %cst_47 = arith.constant 5.000000e-01 : f32
    %72 = vector.broadcast %cst_47 : f32 to vector<64x128xf32>
    %73 = arith.mulf %72, %71 : vector<64x128xf32>
    %cst_48 = arith.constant 4.471500e-02 : f32
    %74 = vector.broadcast %cst_48 : f32 to vector<64x128xf32>
    %75 = arith.mulf %74, %71 : vector<64x128xf32>
    %76 = arith.mulf %75, %71 : vector<64x128xf32>
    %77 = arith.mulf %76, %71 : vector<64x128xf32>
    %78 = arith.addf %71, %77 : vector<64x128xf32>
    %cst_49 = arith.constant 0.797884583 : f32
    %79 = vector.broadcast %cst_49 : f32 to vector<64x128xf32>
    %80 = arith.mulf %79, %78 : vector<64x128xf32>
    %81 = math.tanh %80 : vector<64x128xf32>
    %cst_50 = arith.constant 1.000000e+00 : f32
    %82 = vector.broadcast %cst_50 : f32 to vector<64x128xf32>
    %83 = arith.addf %82, %81 : vector<64x128xf32>
    %84 = arith.mulf %73, %83 : vector<64x128xf32>
    %85 = vector.extract_strided_slice %84 {offsets = [0, 0], sizes = [4, 128], strides = [1, 1]} : vector<64x128xf32> to vector<4x128xf32>
    %86 = vector.extract_strided_slice %85 {offsets = [0, 0], sizes = [4, 64], strides = [1, 1]} : vector<4x128xf32> to vector<4x64xf32>
    %c0_51 = arith.constant 0 : index
    %c0_52 = arith.constant 0 : index
    %c0_53 = arith.constant 0 : index
    %87 = vector.load %arg16[%c0_51, %c0_52, %c0_53] : memref<2x4x1024xf32, #tpu.memory_space<vmem>>, vector<1x4x64xf32>
    %88 = vector.shape_cast %87 : vector<1x4x64xf32> to vector<4x64xf32>
    %89 = vector.shape_cast %86 : vector<4x64xf32> to vector<1x4x64xf32>
    tpu.vector_store %arg16[%c0_51, %c0_52, %c0_53], %89 {strides = array<i32>} : memref<2x4x1024xf32, #tpu.memory_space<vmem>>, vector<1x4x64xf32>,
    %90 = vector.extract_strided_slice %85 {offsets = [0, 64], sizes = [4, 64], strides = [1, 1]} : vector<4x128xf32> to vector<4x64xf32>
    %c1 = arith.constant 1 : index
    %c0_54 = arith.constant 0 : index
    %c0_55 = arith.constant 0 : index
    %91 = vector.load %arg16[%c1, %c0_54, %c0_55] : memref<2x4x1024xf32, #tpu.memory_space<vmem>>, vector<1x4x64xf32>
    %92 = vector.shape_cast %91 : vector<1x4x64xf32> to vector<4x64xf32>
    %93 = vector.shape_cast %90 : vector<4x64xf32> to vector<1x4x64xf32>
    tpu.vector_store %arg16[%c1, %c0_54, %c0_55], %93 {strides = array<i32>} : memref<2x4x1024xf32, #tpu.memory_space<vmem>>, vector<1x4x64xf32>,
    %94 = vector.extract_strided_slice %84 {offsets = [4, 0], sizes = [4, 128], strides = [1, 1]} : vector<64x128xf32> to vector<4x128xf32>
    %95 = vector.extract_strided_slice %94 {offsets = [0, 0], sizes = [4, 64], strides = [1, 1]} : vector<4x128xf32> to vector<4x64xf32>
    %c0_56 = arith.constant 0 : index
    %c0_57 = arith.constant 0 : index
    %c64 = arith.constant 64 : index
    %96 = vector.load %arg16[%c0_56, %c0_57, %c64] : memref<2x4x1024xf32, #tpu.memory_space<vmem>>, vector<1x4x64xf32>
    %97 = vector.shape_cast %96 : vector<1x4x64xf32> to vector<4x64xf32>
    %98 = vector.shape_cast %95 : vector<4x64xf32> to vector<1x4x64xf32>
    tpu.vector_store %arg16[%c0_56, %c0_57, %c64], %98 {strides = array<i32>} : memref<2x4x1024xf32, #tpu.memory_space<vmem>>, vector<1x4x64xf32>,
    %99 = vector.extract_strided_slice %94 {offsets = [0, 64], sizes = [4, 64], strides = [1, 1]} : vector<4x128xf32> to vector<4x64xf32>
    %c1_58 = arith.constant 1 : index
    %c0_59 = arith.constant 0 : index
    %c64_60 = arith.constant 64 : index
    %100 = vector.load %arg16[%c1_58, %c0_59, %c64_60] : memref<2x4x1024xf32, #tpu.memory_space<vmem>>, vector<1x4x64xf32>
    %101 = vector.shape_cast %100 : vector<1x4x64xf32> to vector<4x64xf32>
    %102 = vector.shape_cast %99 : vector<4x64xf32> to vector<1x4x64xf32>
    tpu.vector_store %arg16[%c1_58, %c0_59, %c64_60], %102 {strides = array<i32>} : memref<2x4x1024xf32, #tpu.memory_space<vmem>>, vector<1x4x64xf32>,
    %103 = vector.extract_strided_slice %84 {offsets = [8, 0], sizes = [4, 128], strides = [1, 1]} : vector<64x128xf32> to vector<4x128xf32>
    %104 = vector.extract_strided_slice %103 {offsets = [0, 0], sizes = [4, 64], strides = [1, 1]} : vector<4x128xf32> to vector<4x64xf32>
    %c0_61 = arith.constant 0 : index
    %c0_62 = arith.constant 0 : index
    %c128 = arith.constant 128 : index
    %105 = vector.load %arg16[%c0_61, %c0_62, %c128] : memref<2x4x1024xf32, #tpu.memory_space<vmem>>, vector<1x4x64xf32>
    %106 = vector.shape_cast %105 : vector<1x4x64xf32> to vector<4x64xf32>
    %107 = vector.shape_cast %104 : vector<4x64xf32> to vector<1x4x64xf32>
    tpu.vector_store %arg16[%c0_61, %c0_62, %c128], %107 {strides = array<i32>} : memref<2x4x1024xf32, #tpu.memory_space<vmem>>, vector<1x4x64xf32>,
    %108 = vector.extract_strided_slice %103 {offsets = [0, 64], sizes = [4, 64], strides = [1, 1]} : vector<4x128xf32> to vector<4x64xf32>
    %c1_63 = arith.constant 1 : index
    %c0_64 = arith.constant 0 : index
    %c128_65 = arith.constant 128 : index
    %109 = vector.load %arg16[%c1_63, %c0_64, %c128_65] : memref<2x4x1024xf32, #tpu.memory_space<vmem>>, vector<1x4x64xf32>
    %110 = vector.shape_cast %109 : vector<1x4x64xf32> to vector<4x64xf32>
    %111 = vector.shape_cast %108 : vector<4x64xf32> to vector<1x4x64xf32>
    tpu.vector_store %arg16[%c1_63, %c0_64, %c128_65], %111 {strides = array<i32>} : memref<2x4x1024xf32, #tpu.memory_space<vmem>>, vector<1x4x64xf32>,
    %112 = vector.extract_strided_slice %84 {offsets = [12, 0], sizes = [4, 128], strides = [1, 1]} : vector<64x128xf32> to vector<4x128xf32>
    %113 = vector.extract_strided_slice %112 {offsets = [0, 0], sizes = [4, 64], strides = [1, 1]} : vector<4x128xf32> to vector<4x64xf32>
    %c0_66 = arith.constant 0 : index
    %c0_67 = arith.constant 0 : index
    %c192 = arith.constant 192 : index
    %114 = vector.load %arg16[%c0_66, %c0_67, %c192] : memref<2x4x1024xf32, #tpu.memory_space<vmem>>, vector<1x4x64xf32>
    %115 = vector.shape_cast %114 : vector<1x4x64xf32> to vector<4x64xf32>
    %116 = vector.shape_cast %113 : vector<4x64xf32> to vector<1x4x64xf32>
    tpu.vector_store %arg16[%c0_66, %c0_67, %c192], %116 {strides = array<i32>} : memref<2x4x1024xf32, #tpu.memory_space<vmem>>, vector<1x4x64xf32>,
    %117 = vector.extract_strided_slice %112 {offsets = [0, 64], sizes = [4, 64], strides = [1, 1]} : vector<4x128xf32> to vector<4x64xf32>
    %c1_68 = arith.constant 1 : index
    %c0_69 = arith.constant 0 : index
    %c192_70 = arith.constant 192 : index
    %118 = vector.load %arg16[%c1_68, %c0_69, %c192_70] : memref<2x4x1024xf32, #tpu.memory_space<vmem>>, vector<1x4x64xf32>
    %119 = vector.shape_cast %118 : vector<1x4x64xf32> to vector<4x64xf32>
    %120 = vector.shape_cast %117 : vector<4x64xf32> to vector<1x4x64xf32>
    tpu.vector_store %arg16[%c1_68, %c0_69, %c192_70], %120 {strides = array<i32>} : memref<2x4x1024xf32, #tpu.memory_space<vmem>>, vector<1x4x64xf32>,
    %121 = vector.extract_strided_slice %84 {offsets = [16, 0], sizes = [4, 128], strides = [1, 1]} : vector<64x128xf32> to vector<4x128xf32>
    %122 = vector.extract_strided_slice %121 {offsets = [0, 0], sizes = [4, 64], strides = [1, 1]} : vector<4x128xf32> to vector<4x64xf32>
    %c0_71 = arith.constant 0 : index
    %c0_72 = arith.constant 0 : index
    %c256 = arith.constant 256 : index
    %123 = vector.load %arg16[%c0_71, %c0_72, %c256] : memref<2x4x1024xf32, #tpu.memory_space<vmem>>, vector<1x4x64xf32>
    %124 = vector.shape_cast %123 : vector<1x4x64xf32> to vector<4x64xf32>
    %125 = vector.shape_cast %122 : vector<4x64xf32> to vector<1x4x64xf32>
    tpu.vector_store %arg16[%c0_71, %c0_72, %c256], %125 {strides = array<i32>} : memref<2x4x1024xf32, #tpu.memory_space<vmem>>, vector<1x4x64xf32>,
    %126 = vector.extract_strided_slice %121 {offsets = [0, 64], sizes = [4, 64], strides = [1, 1]} : vector<4x128xf32> to vector<4x64xf32>
    %c1_73 = arith.constant 1 : index
    %c0_74 = arith.constant 0 : index
    %c256_75 = arith.constant 256 : index
    %127 = vector.load %arg16[%c1_73, %c0_74, %c256_75] : memref<2x4x1024xf32, #tpu.memory_space<vmem>>, vector<1x4x64xf32>
    %128 = vector.shape_cast %127 : vector<1x4x64xf32> to vector<4x64xf32>
    %129 = vector.shape_cast %126 : vector<4x64xf32> to vector<1x4x64xf32>
    tpu.vector_store %arg16[%c1_73, %c0_74, %c256_75], %129 {strides = array<i32>} : memref<2x4x1024xf32, #tpu.memory_space<vmem>>, vector<1x4x64xf32>,
    %130 = vector.extract_strided_slice %84 {offsets = [20, 0], sizes = [4, 128], strides = [1, 1]} : vector<64x128xf32> to vector<4x128xf32>
    %131 = vector.extract_strided_slice %130 {offsets = [0, 0], sizes = [4, 64], strides = [1, 1]} : vector<4x128xf32> to vector<4x64xf32>
    %c0_76 = arith.constant 0 : index
    %c0_77 = arith.constant 0 : index
    %c320 = arith.constant 320 : index
    %132 = vector.load %arg16[%c0_76, %c0_77, %c320] : memref<2x4x1024xf32, #tpu.memory_space<vmem>>, vector<1x4x64xf32>
    %133 = vector.shape_cast %132 : vector<1x4x64xf32> to vector<4x64xf32>
    %134 = vector.shape_cast %131 : vector<4x64xf32> to vector<1x4x64xf32>
    tpu.vector_store %arg16[%c0_76, %c0_77, %c320], %134 {strides = array<i32>} : memref<2x4x1024xf32, #tpu.memory_space<vmem>>, vector<1x4x64xf32>,
    %135 = vector.extract_strided_slice %130 {offsets = [0, 64], sizes = [4, 64], strides = [1, 1]} : vector<4x128xf32> to vector<4x64xf32>
    %c1_78 = arith.constant 1 : index
    %c0_79 = arith.constant 0 : index
    %c320_80 = arith.constant 320 : index
    %136 = vector.load %arg16[%c1_78, %c0_79, %c320_80] : memref<2x4x1024xf32, #tpu.memory_space<vmem>>, vector<1x4x64xf32>
    %137 = vector.shape_cast %136 : vector<1x4x64xf32> to vector<4x64xf32>
    %138 = vector.shape_cast %135 : vector<4x64xf32> to vector<1x4x64xf32>
    tpu.vector_store %arg16[%c1_78, %c0_79, %c320_80], %138 {strides = array<i32>} : memref<2x4x1024xf32, #tpu.memory_space<vmem>>, vector<1x4x64xf32>,
    %139 = vector.extract_strided_slice %84 {offsets = [24, 0], sizes = [4, 128], strides = [1, 1]} : vector<64x128xf32> to vector<4x128xf32>
    %140 = vector.extract_strided_slice %139 {offsets = [0, 0], sizes = [4, 64], strides = [1, 1]} : vector<4x128xf32> to vector<4x64xf32>
    %c0_81 = arith.constant 0 : index
    %c0_82 = arith.constant 0 : index
    %c384 = arith.constant 384 : index
    %141 = vector.load %arg16[%c0_81, %c0_82, %c384] : memref<2x4x1024xf32, #tpu.memory_space<vmem>>, vector<1x4x64xf32>
    %142 = vector.shape_cast %141 : vector<1x4x64xf32> to vector<4x64xf32>
    %143 = vector.shape_cast %140 : vector<4x64xf32> to vector<1x4x64xf32>
    tpu.vector_store %arg16[%c0_81, %c0_82, %c384], %143 {strides = array<i32>} : memref<2x4x1024xf32, #tpu.memory_space<vmem>>, vector<1x4x64xf32>,
    %144 = vector.extract_strided_slice %139 {offsets = [0, 64], sizes = [4, 64], strides = [1, 1]} : vector<4x128xf32> to vector<4x64xf32>
    %c1_83 = arith.constant 1 : index
    %c0_84 = arith.constant 0 : index
    %c384_85 = arith.constant 384 : index
    %145 = vector.load %arg16[%c1_83, %c0_84, %c384_85] : memref<2x4x1024xf32, #tpu.memory_space<vmem>>, vector<1x4x64xf32>
    %146 = vector.shape_cast %145 : vector<1x4x64xf32> to vector<4x64xf32>
    %147 = vector.shape_cast %144 : vector<4x64xf32> to vector<1x4x64xf32>
    tpu.vector_store %arg16[%c1_83, %c0_84, %c384_85], %147 {strides = array<i32>} : memref<2x4x1024xf32, #tpu.memory_space<vmem>>, vector<1x4x64xf32>,
    %148 = vector.extract_strided_slice %84 {offsets = [28, 0], sizes = [4, 128], strides = [1, 1]} : vector<64x128xf32> to vector<4x128xf32>
    %149 = vector.extract_strided_slice %148 {offsets = [0, 0], sizes = [4, 64], strides = [1, 1]} : vector<4x128xf32> to vector<4x64xf32>
    %c0_86 = arith.constant 0 : index
    %c0_87 = arith.constant 0 : index
    %c448 = arith.constant 448 : index
    %150 = vector.load %arg16[%c0_86, %c0_87, %c448] : memref<2x4x1024xf32, #tpu.memory_space<vmem>>, vector<1x4x64xf32>
    %151 = vector.shape_cast %150 : vector<1x4x64xf32> to vector<4x64xf32>
    %152 = vector.shape_cast %149 : vector<4x64xf32> to vector<1x4x64xf32>
    tpu.vector_store %arg16[%c0_86, %c0_87, %c448], %152 {strides = array<i32>} : memref<2x4x1024xf32, #tpu.memory_space<vmem>>, vector<1x4x64xf32>,
    %153 = vector.extract_strided_slice %148 {offsets = [0, 64], sizes = [4, 64], strides = [1, 1]} : vector<4x128xf32> to vector<4x64xf32>
    %c1_88 = arith.constant 1 : index
    %c0_89 = arith.constant 0 : index
    %c448_90 = arith.constant 448 : index
    %154 = vector.load %arg16[%c1_88, %c0_89, %c448_90] : memref<2x4x1024xf32, #tpu.memory_space<vmem>>, vector<1x4x64xf32>
    %155 = vector.shape_cast %154 : vector<1x4x64xf32> to vector<4x64xf32>
    %156 = vector.shape_cast %153 : vector<4x64xf32> to vector<1x4x64xf32>
    tpu.vector_store %arg16[%c1_88, %c0_89, %c448_90], %156 {strides = array<i32>} : memref<2x4x1024xf32, #tpu.memory_space<vmem>>, vector<1x4x64xf32>,
    %157 = vector.extract_strided_slice %84 {offsets = [32, 0], sizes = [4, 128], strides = [1, 1]} : vector<64x128xf32> to vector<4x128xf32>
    %158 = vector.extract_strided_slice %157 {offsets = [0, 0], sizes = [4, 64], strides = [1, 1]} : vector<4x128xf32> to vector<4x64xf32>
    %c0_91 = arith.constant 0 : index
    %c0_92 = arith.constant 0 : index
    %c512 = arith.constant 512 : index
    %159 = vector.load %arg16[%c0_91, %c0_92, %c512] : memref<2x4x1024xf32, #tpu.memory_space<vmem>>, vector<1x4x64xf32>
    %160 = vector.shape_cast %159 : vector<1x4x64xf32> to vector<4x64xf32>
    %161 = vector.shape_cast %158 : vector<4x64xf32> to vector<1x4x64xf32>
    tpu.vector_store %arg16[%c0_91, %c0_92, %c512], %161 {strides = array<i32>} : memref<2x4x1024xf32, #tpu.memory_space<vmem>>, vector<1x4x64xf32>,
    %162 = vector.extract_strided_slice %157 {offsets = [0, 64], sizes = [4, 64], strides = [1, 1]} : vector<4x128xf32> to vector<4x64xf32>
    %c1_93 = arith.constant 1 : index
    %c0_94 = arith.constant 0 : index
    %c512_95 = arith.constant 512 : index
    %163 = vector.load %arg16[%c1_93, %c0_94, %c512_95] : memref<2x4x1024xf32, #tpu.memory_space<vmem>>, vector<1x4x64xf32>
    %164 = vector.shape_cast %163 : vector<1x4x64xf32> to vector<4x64xf32>
    %165 = vector.shape_cast %162 : vector<4x64xf32> to vector<1x4x64xf32>
    tpu.vector_store %arg16[%c1_93, %c0_94, %c512_95], %165 {strides = array<i32>} : memref<2x4x1024xf32, #tpu.memory_space<vmem>>, vector<1x4x64xf32>,
    %166 = vector.extract_strided_slice %84 {offsets = [36, 0], sizes = [4, 128], strides = [1, 1]} : vector<64x128xf32> to vector<4x128xf32>
    %167 = vector.extract_strided_slice %166 {offsets = [0, 0], sizes = [4, 64], strides = [1, 1]} : vector<4x128xf32> to vector<4x64xf32>
    %c0_96 = arith.constant 0 : index
    %c0_97 = arith.constant 0 : index
    %c576 = arith.constant 576 : index
    %168 = vector.load %arg16[%c0_96, %c0_97, %c576] : memref<2x4x1024xf32, #tpu.memory_space<vmem>>, vector<1x4x64xf32>
    %169 = vector.shape_cast %168 : vector<1x4x64xf32> to vector<4x64xf32>
    %170 = vector.shape_cast %167 : vector<4x64xf32> to vector<1x4x64xf32>
    tpu.vector_store %arg16[%c0_96, %c0_97, %c576], %170 {strides = array<i32>} : memref<2x4x1024xf32, #tpu.memory_space<vmem>>, vector<1x4x64xf32>,
    %171 = vector.extract_strided_slice %166 {offsets = [0, 64], sizes = [4, 64], strides = [1, 1]} : vector<4x128xf32> to vector<4x64xf32>
    %c1_98 = arith.constant 1 : index
    %c0_99 = arith.constant 0 : index
    %c576_100 = arith.constant 576 : index
    %172 = vector.load %arg16[%c1_98, %c0_99, %c576_100] : memref<2x4x1024xf32, #tpu.memory_space<vmem>>, vector<1x4x64xf32>
    %173 = vector.shape_cast %172 : vector<1x4x64xf32> to vector<4x64xf32>
    %174 = vector.shape_cast %171 : vector<4x64xf32> to vector<1x4x64xf32>
    tpu.vector_store %arg16[%c1_98, %c0_99, %c576_100], %174 {strides = array<i32>} : memref<2x4x1024xf32, #tpu.memory_space<vmem>>, vector<1x4x64xf32>,
    %175 = vector.extract_strided_slice %84 {offsets = [40, 0], sizes = [4, 128], strides = [1, 1]} : vector<64x128xf32> to vector<4x128xf32>
    %176 = vector.extract_strided_slice %175 {offsets = [0, 0], sizes = [4, 64], strides = [1, 1]} : vector<4x128xf32> to vector<4x64xf32>
    %c0_101 = arith.constant 0 : index
    %c0_102 = arith.constant 0 : index
    %c640 = arith.constant 640 : index
    %177 = vector.load %arg16[%c0_101, %c0_102, %c640] : memref<2x4x1024xf32, #tpu.memory_space<vmem>>, vector<1x4x64xf32>
    %178 = vector.shape_cast %177 : vector<1x4x64xf32> to vector<4x64xf32>
    %179 = vector.shape_cast %176 : vector<4x64xf32> to vector<1x4x64xf32>
    tpu.vector_store %arg16[%c0_101, %c0_102, %c640], %179 {strides = array<i32>} : memref<2x4x1024xf32, #tpu.memory_space<vmem>>, vector<1x4x64xf32>,
    %180 = vector.extract_strided_slice %175 {offsets = [0, 64], sizes = [4, 64], strides = [1, 1]} : vector<4x128xf32> to vector<4x64xf32>
    %c1_103 = arith.constant 1 : index
    %c0_104 = arith.constant 0 : index
    %c640_105 = arith.constant 640 : index
    %181 = vector.load %arg16[%c1_103, %c0_104, %c640_105] : memref<2x4x1024xf32, #tpu.memory_space<vmem>>, vector<1x4x64xf32>
    %182 = vector.shape_cast %181 : vector<1x4x64xf32> to vector<4x64xf32>
    %183 = vector.shape_cast %180 : vector<4x64xf32> to vector<1x4x64xf32>
    tpu.vector_store %arg16[%c1_103, %c0_104, %c640_105], %183 {strides = array<i32>} : memref<2x4x1024xf32, #tpu.memory_space<vmem>>, vector<1x4x64xf32>,
    %184 = vector.extract_strided_slice %84 {offsets = [44, 0], sizes = [4, 128], strides = [1, 1]} : vector<64x128xf32> to vector<4x128xf32>
    %185 = vector.extract_strided_slice %184 {offsets = [0, 0], sizes = [4, 64], strides = [1, 1]} : vector<4x128xf32> to vector<4x64xf32>
    %c0_106 = arith.constant 0 : index
    %c0_107 = arith.constant 0 : index
    %c704 = arith.constant 704 : index
    %186 = vector.load %arg16[%c0_106, %c0_107, %c704] : memref<2x4x1024xf32, #tpu.memory_space<vmem>>, vector<1x4x64xf32>
    %187 = vector.shape_cast %186 : vector<1x4x64xf32> to vector<4x64xf32>
    %188 = vector.shape_cast %185 : vector<4x64xf32> to vector<1x4x64xf32>
    tpu.vector_store %arg16[%c0_106, %c0_107, %c704], %188 {strides = array<i32>} : memref<2x4x1024xf32, #tpu.memory_space<vmem>>, vector<1x4x64xf32>,
    %189 = vector.extract_strided_slice %184 {offsets = [0, 64], sizes = [4, 64], strides = [1, 1]} : vector<4x128xf32> to vector<4x64xf32>
    %c1_108 = arith.constant 1 : index
    %c0_109 = arith.constant 0 : index
    %c704_110 = arith.constant 704 : index
    %190 = vector.load %arg16[%c1_108, %c0_109, %c704_110] : memref<2x4x1024xf32, #tpu.memory_space<vmem>>, vector<1x4x64xf32>
    %191 = vector.shape_cast %190 : vector<1x4x64xf32> to vector<4x64xf32>
    %192 = vector.shape_cast %189 : vector<4x64xf32> to vector<1x4x64xf32>
    tpu.vector_store %arg16[%c1_108, %c0_109, %c704_110], %192 {strides = array<i32>} : memref<2x4x1024xf32, #tpu.memory_space<vmem>>, vector<1x4x64xf32>,
    %193 = vector.extract_strided_slice %84 {offsets = [48, 0], sizes = [4, 128], strides = [1, 1]} : vector<64x128xf32> to vector<4x128xf32>
    %194 = vector.extract_strided_slice %193 {offsets = [0, 0], sizes = [4, 64], strides = [1, 1]} : vector<4x128xf32> to vector<4x64xf32>
    %c0_111 = arith.constant 0 : index
    %c0_112 = arith.constant 0 : index
    %c768 = arith.constant 768 : index
    %195 = vector.load %arg16[%c0_111, %c0_112, %c768] : memref<2x4x1024xf32, #tpu.memory_space<vmem>>, vector<1x4x64xf32>
    %196 = vector.shape_cast %195 : vector<1x4x64xf32> to vector<4x64xf32>
    %197 = vector.shape_cast %194 : vector<4x64xf32> to vector<1x4x64xf32>
    tpu.vector_store %arg16[%c0_111, %c0_112, %c768], %197 {strides = array<i32>} : memref<2x4x1024xf32, #tpu.memory_space<vmem>>, vector<1x4x64xf32>,
    %198 = vector.extract_strided_slice %193 {offsets = [0, 64], sizes = [4, 64], strides = [1, 1]} : vector<4x128xf32> to vector<4x64xf32>
    %c1_113 = arith.constant 1 : index
    %c0_114 = arith.constant 0 : index
    %c768_115 = arith.constant 768 : index
    %199 = vector.load %arg16[%c1_113, %c0_114, %c768_115] : memref<2x4x1024xf32, #tpu.memory_space<vmem>>, vector<1x4x64xf32>
    %200 = vector.shape_cast %199 : vector<1x4x64xf32> to vector<4x64xf32>
    %201 = vector.shape_cast %198 : vector<4x64xf32> to vector<1x4x64xf32>
    tpu.vector_store %arg16[%c1_113, %c0_114, %c768_115], %201 {strides = array<i32>} : memref<2x4x1024xf32, #tpu.memory_space<vmem>>, vector<1x4x64xf32>,
    %202 = vector.extract_strided_slice %84 {offsets = [52, 0], sizes = [4, 128], strides = [1, 1]} : vector<64x128xf32> to vector<4x128xf32>
    %203 = vector.extract_strided_slice %202 {offsets = [0, 0], sizes = [4, 64], strides = [1, 1]} : vector<4x128xf32> to vector<4x64xf32>
    %c0_116 = arith.constant 0 : index
    %c0_117 = arith.constant 0 : index
    %c832 = arith.constant 832 : index
    %204 = vector.load %arg16[%c0_116, %c0_117, %c832] : memref<2x4x1024xf32, #tpu.memory_space<vmem>>, vector<1x4x64xf32>
    %205 = vector.shape_cast %204 : vector<1x4x64xf32> to vector<4x64xf32>
    %206 = vector.shape_cast %203 : vector<4x64xf32> to vector<1x4x64xf32>
    tpu.vector_store %arg16[%c0_116, %c0_117, %c832], %206 {strides = array<i32>} : memref<2x4x1024xf32, #tpu.memory_space<vmem>>, vector<1x4x64xf32>,
    %207 = vector.extract_strided_slice %202 {offsets = [0, 64], sizes = [4, 64], strides = [1, 1]} : vector<4x128xf32> to vector<4x64xf32>
    %c1_118 = arith.constant 1 : index
    %c0_119 = arith.constant 0 : index
    %c832_120 = arith.constant 832 : index
    %208 = vector.load %arg16[%c1_118, %c0_119, %c832_120] : memref<2x4x1024xf32, #tpu.memory_space<vmem>>, vector<1x4x64xf32>
    %209 = vector.shape_cast %208 : vector<1x4x64xf32> to vector<4x64xf32>
    %210 = vector.shape_cast %207 : vector<4x64xf32> to vector<1x4x64xf32>
    tpu.vector_store %arg16[%c1_118, %c0_119, %c832_120], %210 {strides = array<i32>} : memref<2x4x1024xf32, #tpu.memory_space<vmem>>, vector<1x4x64xf32>,
    %211 = vector.extract_strided_slice %84 {offsets = [56, 0], sizes = [4, 128], strides = [1, 1]} : vector<64x128xf32> to vector<4x128xf32>
    %212 = vector.extract_strided_slice %211 {offsets = [0, 0], sizes = [4, 64], strides = [1, 1]} : vector<4x128xf32> to vector<4x64xf32>
    %c0_121 = arith.constant 0 : index
    %c0_122 = arith.constant 0 : index
    %c896 = arith.constant 896 : index
    %213 = vector.load %arg16[%c0_121, %c0_122, %c896] : memref<2x4x1024xf32, #tpu.memory_space<vmem>>, vector<1x4x64xf32>
    %214 = vector.shape_cast %213 : vector<1x4x64xf32> to vector<4x64xf32>
    %215 = vector.shape_cast %212 : vector<4x64xf32> to vector<1x4x64xf32>
    tpu.vector_store %arg16[%c0_121, %c0_122, %c896], %215 {strides = array<i32>} : memref<2x4x1024xf32, #tpu.memory_space<vmem>>, vector<1x4x64xf32>,
    %216 = vector.extract_strided_slice %211 {offsets = [0, 64], sizes = [4, 64], strides = [1, 1]} : vector<4x128xf32> to vector<4x64xf32>
    %c1_123 = arith.constant 1 : index
    %c0_124 = arith.constant 0 : index
    %c896_125 = arith.constant 896 : index
    %217 = vector.load %arg16[%c1_123, %c0_124, %c896_125] : memref<2x4x1024xf32, #tpu.memory_space<vmem>>, vector<1x4x64xf32>
    %218 = vector.shape_cast %217 : vector<1x4x64xf32> to vector<4x64xf32>
    %219 = vector.shape_cast %216 : vector<4x64xf32> to vector<1x4x64xf32>
    tpu.vector_store %arg16[%c1_123, %c0_124, %c896_125], %219 {strides = array<i32>} : memref<2x4x1024xf32, #tpu.memory_space<vmem>>, vector<1x4x64xf32>,
    %220 = vector.extract_strided_slice %84 {offsets = [60, 0], sizes = [4, 128], strides = [1, 1]} : vector<64x128xf32> to vector<4x128xf32>
    %221 = vector.extract_strided_slice %220 {offsets = [0, 0], sizes = [4, 64], strides = [1, 1]} : vector<4x128xf32> to vector<4x64xf32>
    %c0_126 = arith.constant 0 : index
    %c0_127 = arith.constant 0 : index
    %c960 = arith.constant 960 : index
    %222 = vector.load %arg16[%c0_126, %c0_127, %c960] : memref<2x4x1024xf32, #tpu.memory_space<vmem>>, vector<1x4x64xf32>
    %223 = vector.shape_cast %222 : vector<1x4x64xf32> to vector<4x64xf32>
    %224 = vector.shape_cast %221 : vector<4x64xf32> to vector<1x4x64xf32>
    tpu.vector_store %arg16[%c0_126, %c0_127, %c960], %224 {strides = array<i32>} : memref<2x4x1024xf32, #tpu.memory_space<vmem>>, vector<1x4x64xf32>,
    %225 = vector.extract_strided_slice %220 {offsets = [0, 64], sizes = [4, 64], strides = [1, 1]} : vector<4x128xf32> to vector<4x64xf32>
    %c1_128 = arith.constant 1 : index
    %c0_129 = arith.constant 0 : index
    %c960_130 = arith.constant 960 : index
    %226 = vector.load %arg16[%c1_128, %c0_129, %c960_130] : memref<2x4x1024xf32, #tpu.memory_space<vmem>>, vector<1x4x64xf32>
    %227 = vector.shape_cast %226 : vector<1x4x64xf32> to vector<4x64xf32>
    %228 = vector.shape_cast %225 : vector<4x64xf32> to vector<1x4x64xf32>
    tpu.vector_store %arg16[%c1_128, %c0_129, %c960_130], %228 {strides = array<i32>} : memref<2x4x1024xf32, #tpu.memory_space<vmem>>, vector<1x4x64xf32>,
    %229 = vector.extract_strided_slice %19 {offsets = [0, 0], sizes = [1, 4], strides = [1, 1]} : vector<2x20xf32> to vector<1x4xf32>
    %230 = vector.extract_strided_slice %19 {offsets = [0, 4], sizes = [1, 4], strides = [1, 1]} : vector<2x20xf32> to vector<1x4xf32>
    %231 = vector.extract_strided_slice %19 {offsets = [0, 8], sizes = [1, 4], strides = [1, 1]} : vector<2x20xf32> to vector<1x4xf32>
    %232 = vector.extract_strided_slice %19 {offsets = [0, 12], sizes = [1, 4], strides = [1, 1]} : vector<2x20xf32> to vector<1x4xf32>
    %233 = tpu.concatenate %229, %230, %231, %232 in 0 : vector<1x4xf32>, vector<1x4xf32>, vector<1x4xf32>, vector<1x4xf32> -> vector<4x4xf32>
    %c0_131 = arith.constant 0 : index
    %c0_132 = arith.constant 0 : index
    %c0_133 = arith.constant 0 : index
    %234 = vector.load %arg16[%c0_131, %c0_132, %c0_133] : memref<2x4x1024xf32, #tpu.memory_space<vmem>>, vector<1x4x1024xf32>
    %235 = vector.shape_cast %234 : vector<1x4x1024xf32> to vector<4x1024xf32>
    %cst_134 = arith.constant dense<0.000000e+00> : vector<4x1024xf32>
    %236 = tpu.matmul %233, %235, %cst_134 {dimension_numbers = #tpu.dot_dimension_numbers<[1], [0], [0], [1], [0, 0, 1, 1], [], []>} : vector<4x4xf32>, vector<4x1024xf32>, vector<4x1024xf32> -> vector<4x1024xf32>
    %c0_135 = arith.constant 0 : index
    %c0_136 = arith.constant 0 : index
    %c0_137 = arith.constant 0 : index
    %237 = vector.load %arg14[%c0_135, %c0_136, %c0_137] : memref<2x4x1024xf32, #tpu.memory_space<vmem>>, vector<1x4x1024xf32>
    %238 = vector.shape_cast %237 : vector<1x4x1024xf32> to vector<4x1024xf32>
    %239 = vector.shape_cast %236 : vector<4x1024xf32> to vector<1x4x1024xf32>
    tpu.vector_store %arg14[%c0_135, %c0_136, %c0_137], %239 {strides = array<i32>} : memref<2x4x1024xf32, #tpu.memory_space<vmem>>, vector<1x4x1024xf32>,
    %240 = vector.extract_strided_slice %19 {offsets = [1, 0], sizes = [1, 4], strides = [1, 1]} : vector<2x20xf32> to vector<1x4xf32>
    %241 = vector.extract_strided_slice %19 {offsets = [1, 4], sizes = [1, 4], strides = [1, 1]} : vector<2x20xf32> to vector<1x4xf32>
    %242 = vector.extract_strided_slice %19 {offsets = [1, 8], sizes = [1, 4], strides = [1, 1]} : vector<2x20xf32> to vector<1x4xf32>
    %243 = vector.extract_strided_slice %19 {offsets = [1, 12], sizes = [1, 4], strides = [1, 1]} : vector<2x20xf32> to vector<1x4xf32>
    %244 = tpu.concatenate %240, %241, %242, %243 in 0 : vector<1x4xf32>, vector<1x4xf32>, vector<1x4xf32>, vector<1x4xf32> -> vector<4x4xf32>
    %c1_138 = arith.constant 1 : index
    %c0_139 = arith.constant 0 : index
    %c0_140 = arith.constant 0 : index
    %245 = vector.load %arg16[%c1_138, %c0_139, %c0_140] : memref<2x4x1024xf32, #tpu.memory_space<vmem>>, vector<1x4x1024xf32>
    %246 = vector.shape_cast %245 : vector<1x4x1024xf32> to vector<4x1024xf32>
    %cst_141 = arith.constant dense<0.000000e+00> : vector<4x1024xf32>
    %247 = tpu.matmul %244, %246, %cst_141 {dimension_numbers = #tpu.dot_dimension_numbers<[1], [0], [0], [1], [0, 0, 1, 1], [], []>} : vector<4x4xf32>, vector<4x1024xf32>, vector<4x1024xf32> -> vector<4x1024xf32>
    %c1_142 = arith.constant 1 : index
    %c0_143 = arith.constant 0 : index
    %c0_144 = arith.constant 0 : index
    %248 = vector.load %arg14[%c1_142, %c0_143, %c0_144] : memref<2x4x1024xf32, #tpu.memory_space<vmem>>, vector<1x4x1024xf32>
    %249 = vector.shape_cast %248 : vector<1x4x1024xf32> to vector<4x1024xf32>
    %250 = vector.shape_cast %247 : vector<4x1024xf32> to vector<1x4x1024xf32>
    tpu.vector_store %arg14[%c1_142, %c0_143, %c0_144], %250 {strides = array<i32>} : memref<2x4x1024xf32, #tpu.memory_space<vmem>>, vector<1x4x1024xf32>,
    return
  }
}

</mosaic_0001>

<llo_original>
// kernel: mask_decoder_forward.1
$region0: #{mask_decoder_forward.1}
  #allocation0 [shape = 'u32[]', space=smem, size = 0x4, offset = 0x4, fixed_abs, tag = 'smem constant byte address 0x4 - core index']
  #allocation1 [shape = 'u32[144,128]{1,0:T(1,128)}', space=vmem, size = 0x12000, scoped, tag = 'internal scratch']
  #allocation2 [shape = 'f32[2,4,1024]{2,1,0:T(4,128)}', space=vmem, size = 0x8000, scoped, tag = 'scratch operand']
  %s0 = inlined_call_operand.vmem [shape: f32[128,32], index: 0, kind: input, shape index: {}]
  %s1 = inlined_call_operand.vmem [shape: f32[2,160], index: 1, kind: input, shape index: {}]
  %s2 = inlined_call_operand.vmem [shape: f32[32,32], index: 2, kind: input, shape index: {}]
  %s3 = inlined_call_operand.vmem [shape: f32[1,8,1], index: 3, kind: input, shape index: {}]
  %s4 = inlined_call_operand.vmem [shape: f32[1,8,1], index: 4, kind: input, shape index: {}]
  %s5 = inlined_call_operand.vmem [shape: f32[1,8,1], index: 5, kind: input, shape index: {}]
  %s6 = inlined_call_operand.vmem [shape: f32[64,32], index: 6, kind: input, shape index: {}]
  %s7 = inlined_call_operand.vmem [shape: f32[64,1], index: 7, kind: input, shape index: {}]
  %s8 = inlined_call_operand.vmem [shape: f32[160,192], index: 8, kind: input, shape index: {}]
  %s9 = inlined_call_operand.vmem [shape: f32[1,192], index: 9, kind: input, shape index: {}]
  %s10 = inlined_call_operand.vmem [shape: f32[192,192], index: 10, kind: input, shape index: {}]
  %s11 = inlined_call_operand.vmem [shape: f32[1,192], index: 11, kind: input, shape index: {}]
  %s12 = inlined_call_operand.vmem [shape: f32[192,20], index: 12, kind: input, shape index: {}]
  %s13 = inlined_call_operand.vmem [shape: f32[1,20], index: 13, kind: input, shape index: {}]
  %s14 = inlined_call_operand.vmem [shape: f32[2,4,1024], index: 14, kind: output, shape index: {0}]
  %s15 = inlined_call_operand.vmem [shape: f32[2,4], index: 15, kind: output, shape index: {1}]
  %16 = xla_tuple %s14, %s15
  %s17 = sld [smem:[#allocation0]]
  $region74: #{mask_decoder_forward.1} parent=0
    _
  %s19 = ssub.s32 1, %s17
  %s20 = scalar_select 0, %s19, %s17
  // Predicated region
  $region2: #{mask_decoder_forward.1} parent=0 // pred_check
    _
  $region3: #{mask_decoder_forward.1} parent=0 // pred_check_branch
    %22 = sbr.rel (0) target = $region5
  $region4: #{mask_decoder_forward.1} parent=0 // pred_region
    _
  $region5: #{mask_decoder_forward.1} parent=0 // pred_fallthru
    _
  // Predicated region
  $region6: #{mask_decoder_forward.1} parent=0 // pred_check
    _
  $region7: #{mask_decoder_forward.1} parent=0 // pred_check_branch
    %24 = sbr.rel (0) target = $region9
  $region8: #{mask_decoder_forward.1} parent=0 // pred_region
    _
  $region9: #{mask_decoder_forward.1} parent=0 // pred_fallthru
    _
  // Predicated region
  $region10: #{mask_decoder_forward.1} parent=0 // pred_check
    _
  $region11: #{mask_decoder_forward.1} parent=0 // pred_check_branch
    %26 = sbr.rel (0) target = $region13
  $region12: #{mask_decoder_forward.1} parent=0 // pred_region
    _
  $region13: #{mask_decoder_forward.1} parent=0 // pred_fallthru
    _
  // Predicated region
  $region14: #{mask_decoder_forward.1} parent=0 // pred_check
    _
  $region15: #{mask_decoder_forward.1} parent=0 // pred_check_branch
    %28 = sbr.rel (0) target = $region17
  $region16: #{mask_decoder_forward.1} parent=0 // pred_region
    _
  $region17: #{mask_decoder_forward.1} parent=0 // pred_fallthru
    _
  // Predicated region
  $region18: #{mask_decoder_forward.1} parent=0 // pred_check
    _
  $region19: #{mask_decoder_forward.1} parent=0 // pred_check_branch
    %30 = sbr.rel (0) target = $region21
  $region20: #{mask_decoder_forward.1} parent=0 // pred_region
    _
  $region21: #{mask_decoder_forward.1} parent=0 // pred_fallthru
    _
  // Predicated region
  $region22: #{mask_decoder_forward.1} parent=0 // pred_check
    _
  $region23: #{mask_decoder_forward.1} parent=0 // pred_check_branch
    %32 = sbr.rel (0) target = $region25
  $region24: #{mask_decoder_forward.1} parent=0 // pred_region
    _
  $region25: #{mask_decoder_forward.1} parent=0 // pred_fallthru
    _
  // Predicated region
  $region26: #{mask_decoder_forward.1} parent=0 // pred_check
    _
  $region27: #{mask_decoder_forward.1} parent=0 // pred_check_branch
    %34 = sbr.rel (0) target = $region29
  $region28: #{mask_decoder_forward.1} parent=0 // pred_region
    _
  $region29: #{mask_decoder_forward.1} parent=0 // pred_fallthru
    _
  // Predicated region
  $region30: #{mask_decoder_forward.1} parent=0 // pred_check
    _
  $region31: #{mask_decoder_forward.1} parent=0 // pred_check_branch
    %36 = sbr.rel (0) target = $region33
  $region32: #{mask_decoder_forward.1} parent=0 // pred_region
    _
  $region33: #{mask_decoder_forward.1} parent=0 // pred_fallthru
    _
  // Predicated region
  $region34: #{mask_decoder_forward.1} parent=0 // pred_check
    _
  $region35: #{mask_decoder_forward.1} parent=0 // pred_check_branch
    %38 = sbr.rel (0) target = $region37
  $region36: #{mask_decoder_forward.1} parent=0 // pred_region
    _
  $region37: #{mask_decoder_forward.1} parent=0 // pred_fallthru
    _
  // Predicated region
  $region38: #{mask_decoder_forward.1} parent=0 // pred_check
    _
  $region39: #{mask_decoder_forward.1} parent=0 // pred_check_branch
    %40 = sbr.rel (0) target = $region41
  $region40: #{mask_decoder_forward.1} parent=0 // pred_region
    _
  $region41: #{mask_decoder_forward.1} parent=0 // pred_fallthru
    _
  // Predicated region
  $region42: #{mask_decoder_forward.1} parent=0 // pred_check
    _
  $region43: #{mask_decoder_forward.1} parent=0 // pred_check_branch
    %42 = sbr.rel (0) target = $region45
  $region44: #{mask_decoder_forward.1} parent=0 // pred_region
    _
  $region45: #{mask_decoder_forward.1} parent=0 // pred_fallthru
    _
  // Predicated region
  $region46: #{mask_decoder_forward.1} parent=0 // pred_check
    _
  $region47: #{mask_decoder_forward.1} parent=0 // pred_check_branch
    %44 = sbr.rel (0) target = $region49
  $region48: #{mask_decoder_forward.1} parent=0 // pred_region
    _
  $region49: #{mask_decoder_forward.1} parent=0 // pred_fallthru
    _
  // Predicated region
  $region50: #{mask_decoder_forward.1} parent=0 // pred_check
    _
  $region51: #{mask_decoder_forward.1} parent=0 // pred_check_branch
    %46 = sbr.rel (0) target = $region53
  $region52: #{mask_decoder_forward.1} parent=0 // pred_region
    _
  $region53: #{mask_decoder_forward.1} parent=0 // pred_fallthru
    _
  // Predicated region
  $region54: #{mask_decoder_forward.1} parent=0 // pred_check
    _
  $region55: #{mask_decoder_forward.1} parent=0 // pred_check_branch
    %48 = sbr.rel (0) target = $region57
  $region56: #{mask_decoder_forward.1} parent=0 // pred_region
    _
  $region57: #{mask_decoder_forward.1} parent=0 // pred_fallthru
    _
  %v49 = vld [vmem:[%s1] sm:$0xf]
  %v50 = vld [vmem:[%s8] sm:$0xff]
  %v51 = vld [vmem:[%s8 + $0x8] sm:$0xff]
  %v52 = vld [vmem:[%s8 + $0x10] sm:$0xff]
  %v53 = vld [vmem:[%s8 + $0x18] sm:$0xff]
  %v54 = vld [vmem:[%s8 + $0x20] sm:$0xff]
  %v55 = vld [vmem:[%s8 + $0x28] sm:$0xff]
  %v56 = vld [vmem:[%s8 + $0x30] sm:$0xff]
  %v57 = vld [vmem:[%s8 + $0x38] sm:$0xff]
  %v58 = vld [vmem:[%s8 + $0x40] sm:$0xff]
  %v59 = vld [vmem:[%s8 + $0x48] sm:$0xff]
  %v60 = vld [vmem:[%s8 + $0x50] sm:$0xff]
  %v61 = vld [vmem:[%s8 + $0x58] sm:$0xff]
  %v62 = vld [vmem:[%s8 + $0x60] sm:$0xff]
  %v63 = vld [vmem:[%s8 + $0x68] sm:$0xff]
  %v64 = vld [vmem:[%s8 + $0x70] sm:$0xff]
  %v65 = vld [vmem:[%s8 + $0x78] sm:$0xff]
  %v66 = vld [vmem:[%s8 + $0x80] sm:$0xff]
  %v67 = vld [vmem:[%s8 + $0x88] sm:$0xff]
  %v68 = vld [vmem:[%s8 + $0x90] sm:$0xff]
  %v69 = vld [vmem:[%s8 + $0x98] sm:$0xff]
  %v70 = vld [vmem:[%s8 + $0xa0] sm:$0xff]
  %v71 = vld [vmem:[%s8 + $0xa8] sm:$0xff]
  %v72 = vld [vmem:[%s8 + $0xb0] sm:$0xff]
  %v73 = vld [vmem:[%s8 + $0xb8] sm:$0xff]
  %v74 = vld [vmem:[%s8 + $0xc0] sm:$0xff]
  %v75 = vld [vmem:[%s8 + $0xc8] sm:$0xff]
  %v76 = vld [vmem:[%s8 + $0xd0] sm:$0xff]
  %v77 = vld [vmem:[%s8 + $0xd8] sm:$0xff]
  %v78 = vld [vmem:[%s8 + $0xe0] sm:$0xff]
  %v79 = vld [vmem:[%s8 + $0xe8] sm:$0xff]
  %v80 = vld [vmem:[%s8 + $0xf0] sm:$0xff]
  %v81 = vld [vmem:[%s8 + $0xf8] sm:$0xff]
  %v82 = vld [vmem:[%s8 + $0x100] sm:$0xff]
  %v83 = vld [vmem:[%s8 + $0x108] sm:$0xff]
  %v84 = vld [vmem:[%s8 + $0x110] sm:$0xff]
  %v85 = vld [vmem:[%s8 + $0x118] sm:$0xff]
  %v86 = vld [vmem:[%s8 + $0x120] sm:$0xff]
  %v87 = vld [vmem:[%s8 + $0x128] sm:$0xff]
  %v88 = vld [vmem:[%s8 + $0x130] sm:$0xff]
  %v89 = vld [vmem:[%s8 + $0x138] sm:$0xff]
  %v90 = vld [vmem:[%s9] sm:$0x3]
  %v92 = vlaneseq
  %v93 = vshrl.u32 %v92, 7
  %v94 = vsub.s32 0, %v93
  %v95 = vrot.slane %v90, %v94
  %v96 = vlaneseq
  %v97 = vshrl.u32 %v96, 7
  %v98 = vsub.s32 1, %v97
  %v99 = vrot.slane %v90, %v98
  %v104 = vunpack.c.l.s4 1983009808
  %v105 = vunpack.c.0.s8 %v104
  %v106 = vlaneseq
  %v107 = vshrl.u32 %v106, 7
  %v108 = vsub.s32 %v105, %v107
  %v109 = vrot.slane %v49, %v108
  %v110 = vcombine.high %v109, %v109
  %vm112 = vcmask 261120
  %v113 = vsel %vm112, %v110, 0
  %115 = vmatprep.subr.mxu0 %v81
  %116 = vmatpush1.msra.mxu0 %v80
  %117 = vmatprep.subr.mxu0 %v79
  %118 = vmatpush1.msra.mxu0 %v78
  %119 = vmatprep.subr.mxu0 %v77
  %120 = vmatpush1.msra.mxu0 %v76
  %121 = vmatprep.subr.mxu0 %v75
  %122 = vmatpush1.msra.mxu0 %v74
  %123 = vmatprep.subr.mxu0 %v73
  %124 = vmatpush1.msra.mxu0 %v72
  %125 = vmatprep.subr.mxu0 %v71
  %126 = vmatpush1.msra.mxu0 %v70
  %127 = vmatprep.subr.mxu0 %v69
  %128 = vmatpush1.msra.mxu0 %v68
  %129 = vmatprep.subr.mxu0 %v67
  %130 = vmatpush1.msra.mxu0 %v66
  %131 = vmatprep.subr.mxu0 %v65
  %132 = vmatpush1.msra.mxu0 %v64
  %133 = vmatprep.subr.mxu0 %v63
  %134 = vmatpush1.msra.mxu0 %v62
  %135 = vmatprep.subr.mxu0 %v61
  %136 = vmatpush1.msra.mxu0 %v60
  %137 = vmatprep.subr.mxu0 %v59
  %138 = vmatpush1.msra.mxu0 %v58
  %139 = vmatprep.subr.mxu0 %v57
  %140 = vmatpush1.msra.mxu0 %v56
  %141 = vmatprep.subr.mxu0 %v55
  %142 = vmatpush1.msra.mxu0 %v54
  %143 = vmatprep.subr.mxu0 %v53
  %144 = vmatpush1.msra.mxu0 %v52
  %145 = vmatprep.subr.mxu0 %v51
  %146 = vmatpush1.msra.mxu0 %v50
  %147 = vmatprep.subr.mxu0 0.0
  %148 = vmatpush2.msra.mxu0 0.0
  %149 = vmatprep.subr.mxu0 0.0
  %150 = vmatpush2.msra.mxu0 0.0
  %151 = vmatprep.subr.mxu0 0.0
  %152 = vmatpush2.msra.mxu0 0.0
  %153 = vmatprep.subr.mxu0 0.0
  %154 = vmatpush2.msra.mxu0 0.0
  %155 = vmatprep.subr.mxu0 0.0
  %156 = vmatpush2.msra.mxu0 0.0
  %157 = vmatprep.subr.mxu0 0.0
  %158 = vmatpush2.msra.mxu0 0.0
  %159 = vmatprep.subr.mxu0 0.0
  %160 = vmatpush2.msra.mxu0 0.0
  %161 = vmatprep.subr.mxu0 0.0
  %162 = vmatpush2.msra.mxu0 0.0
  %163 = vmatprep.subr.mxu0 0.0
  %164 = vmatpush2.msra.mxu0 0.0
  %165 = vmatprep.subr.mxu0 0.0
  %166 = vmatpush2.msra.mxu0 0.0
  %167 = vmatprep.subr.mxu0 0.0
  %168 = vmatpush2.msra.mxu0 0.0
  %169 = vmatprep.subr.mxu0 0.0
  %170 = vmatpush2.msra.mxu0 0.0
  %171 = vmatprep.subr.mxu0 %v89
  %172 = vmatpush2.msra.mxu0 %v88
  %173 = vmatprep.subr.mxu0 %v87
  %174 = vmatpush2.msra.mxu0 %v86
  %175 = vmatprep.subr.mxu0 %v85
  %176 = vmatpush2.msra.mxu0 %v84
  %177 = vmatprep.subr.mxu0 %v83
  %178 = vmatpush2.msra.mxu0 %v82
  %179 = vmatprep.mubr.f32.mxu0 %v113
  %180 = vmatmul.mubr.f32.gmra.mxu0 %v109
  %v181 = vpop.f32.mrf.mxu0
  %v182 = vadd.f32 %v95, %v181
  %v183 = vpop.f32.mrf.mxu0
  %v184 = vadd.f32 %v99, %v183
  %185 = vdwg.mxu0
  %v186 = vmax.f32 %v182, 0.0
  %v187 = vmax.f32 %v184, 0.0
  %v188 = vld [vmem:[%s10] sm:$0xff]
  %v189 = vld [vmem:[%s10 + $0x8] sm:$0xff]
  %v190 = vld [vmem:[%s10 + $0x10] sm:$0xff]
  %v191 = vld [vmem:[%s10 + $0x18] sm:$0xff]
  %v192 = vld [vmem:[%s10 + $0x20] sm:$0xff]
  %v193 = vld [vmem:[%s10 + $0x28] sm:$0xff]
  %v194 = vld [vmem:[%s10 + $0x30] sm:$0xff]
  %v195 = vld [vmem:[%s10 + $0x38] sm:$0xff]
  %v196 = vld [vmem:[%s10 + $0x40] sm:$0xff]
  %v197 = vld [vmem:[%s10 + $0x48] sm:$0xff]
  %v198 = vld [vmem:[%s10 + $0x50] sm:$0xff]
  %v199 = vld [vmem:[%s10 + $0x58] sm:$0xff]
  %v200 = vld [vmem:[%s10 + $0x60] sm:$0xff]
  %v201 = vld [vmem:[%s10 + $0x68] sm:$0xff]
  %v202 = vld [vmem:[%s10 + $0x70] sm:$0xff]
  %v203 = vld [vmem:[%s10 + $0x78] sm:$0xff]
  %v204 = vld [vmem:[%s10 + $0x80] sm:$0xff]
  %v205 = vld [vmem:[%s10 + $0x88] sm:$0xff]
  %v206 = vld [vmem:[%s10 + $0x90] sm:$0xff]
  %v207 = vld [vmem:[%s10 + $0x98] sm:$0xff]
  %v208 = vld [vmem:[%s10 + $0xa0] sm:$0xff]
  %v209 = vld [vmem:[%s10 + $0xa8] sm:$0xff]
  %v210 = vld [vmem:[%s10 + $0xb0] sm:$0xff]
  %v211 = vld [vmem:[%s10 + $0xb8] sm:$0xff]
  %v212 = vld [vmem:[%s10 + $0xc0] sm:$0xff]
  %v213 = vld [vmem:[%s10 + $0xc8] sm:$0xff]
  %v214 = vld [vmem:[%s10 + $0xd0] sm:$0xff]
  %v215 = vld [vmem:[%s10 + $0xd8] sm:$0xff]
  %v216 = vld [vmem:[%s10 + $0xe0] sm:$0xff]
  %v217 = vld [vmem:[%s10 + $0xe8] sm:$0xff]
  %v218 = vld [vmem:[%s10 + $0xf0] sm:$0xff]
  %v219 = vld [vmem:[%s10 + $0xf8] sm:$0xff]
  %v220 = vld [vmem:[%s10 + $0x100] sm:$0xff]
  %v221 = vld [vmem:[%s10 + $0x108] sm:$0xff]
  %v222 = vld [vmem:[%s10 + $0x110] sm:$0xff]
  %v223 = vld [vmem:[%s10 + $0x118] sm:$0xff]
  %v224 = vld [vmem:[%s10 + $0x120] sm:$0xff]
  %v225 = vld [vmem:[%s10 + $0x128] sm:$0xff]
  %v226 = vld [vmem:[%s10 + $0x130] sm:$0xff]
  %v227 = vld [vmem:[%s10 + $0x138] sm:$0xff]
  %v228 = vld [vmem:[%s10 + $0x140] sm:$0xff]
  %v229 = vld [vmem:[%s10 + $0x148] sm:$0xff]
  %v230 = vld [vmem:[%s10 + $0x150] sm:$0xff]
  %v231 = vld [vmem:[%s10 + $0x158] sm:$0xff]
  %v232 = vld [vmem:[%s10 + $0x160] sm:$0xff]
  %v233 = vld [vmem:[%s10 + $0x168] sm:$0xff]
  %v234 = vld [vmem:[%s10 + $0x170] sm:$0xff]
  %v235 = vld [vmem:[%s10 + $0x178] sm:$0xff]
  %v236 = vld [vmem:[%s11] sm:$0x3]
  %v238 = vlaneseq
  %v239 = vshrl.u32 %v238, 7
  %v240 = vsub.s32 0, %v239
  %v241 = vrot.slane %v236, %v240
  %v242 = vlaneseq
  %v243 = vshrl.u32 %v242, 7
  %v244 = vsub.s32 1, %v243
  %v245 = vrot.slane %v236, %v244
  %vm248 = vcmask 523264
  %v250 = vsel %vm248, %v187, 0
  %252 = vmatprep.subr.mxu0 %v219
  %253 = vmatpush1.msra.mxu0 %v218
  %254 = vmatprep.subr.mxu0 %v217
  %255 = vmatpush1.msra.mxu0 %v216
  %256 = vmatprep.subr.mxu0 %v215
  %257 = vmatpush1.msra.mxu0 %v214
  %258 = vmatprep.subr.mxu0 %v213
  %259 = vmatpush1.msra.mxu0 %v212
  %260 = vmatprep.subr.mxu0 %v211
  %261 = vmatpush1.msra.mxu0 %v210
  %262 = vmatprep.subr.mxu0 %v209
  %263 = vmatpush1.msra.mxu0 %v208
  %264 = vmatprep.subr.mxu0 %v207
  %265 = vmatpush1.msra.mxu0 %v206
  %266 = vmatprep.subr.mxu0 %v205
  %267 = vmatpush1.msra.mxu0 %v204
  %268 = vmatprep.subr.mxu0 %v203
  %269 = vmatpush1.msra.mxu0 %v202
  %270 = vmatprep.subr.mxu0 %v201
  %271 = vmatpush1.msra.mxu0 %v200
  %272 = vmatprep.subr.mxu0 %v199
  %273 = vmatpush1.msra.mxu0 %v198
  %274 = vmatprep.subr.mxu0 %v197
  %275 = vmatpush1.msra.mxu0 %v196
  %276 = vmatprep.subr.mxu0 %v195
  %277 = vmatpush1.msra.mxu0 %v194
  %278 = vmatprep.subr.mxu0 %v193
  %279 = vmatpush1.msra.mxu0 %v192
  %280 = vmatprep.subr.mxu0 %v191
  %281 = vmatpush1.msra.mxu0 %v190
  %282 = vmatprep.subr.mxu0 %v189
  %283 = vmatpush1.msra.mxu0 %v188
  %284 = vmatprep.subr.mxu0 0.0
  %285 = vmatpush2.msra.mxu0 0.0
  %286 = vmatprep.subr.mxu0 0.0
  %287 = vmatpush2.msra.mxu0 0.0
  %288 = vmatprep.subr.mxu0 0.0
  %289 = vmatpush2.msra.mxu0 0.0
  %290 = vmatprep.subr.mxu0 0.0
  %291 = vmatpush2.msra.mxu0 0.0
  %292 = vmatprep.subr.mxu0 0.0
  %293 = vmatpush2.msra.mxu0 0.0
  %294 = vmatprep.subr.mxu0 0.0
  %295 = vmatpush2.msra.mxu0 0.0
  %296 = vmatprep.subr.mxu0 0.0
  %297 = vmatpush2.msra.mxu0 0.0
  %298 = vmatprep.subr.mxu0 0.0
  %299 = vmatpush2.msra.mxu0 0.0
  %300 = vmatprep.subr.mxu0 %v235
  %301 = vmatpush2.msra.mxu0 %v234
  %302 = vmatprep.subr.mxu0 %v233
  %303 = vmatpush2.msra.mxu0 %v232
  %304 = vmatprep.subr.mxu0 %v231
  %305 = vmatpush2.msra.mxu0 %v230
  %306 = vmatprep.subr.mxu0 %v229
  %307 = vmatpush2.msra.mxu0 %v228
  %308 = vmatprep.subr.mxu0 %v227
  %309 = vmatpush2.msra.mxu0 %v226
  %310 = vmatprep.subr.mxu0 %v225
  %311 = vmatpush2.msra.mxu0 %v224
  %312 = vmatprep.subr.mxu0 %v223
  %313 = vmatpush2.msra.mxu0 %v222
  %314 = vmatprep.subr.mxu0 %v221
  %315 = vmatpush2.msra.mxu0 %v220
  %316 = vmatprep.mubr.f32.mxu0 %v250
  %317 = vmatmul.mubr.f32.gmra.mxu0 %v186
  %v318 = vpop.f32.mrf.mxu0
  %v319 = vadd.f32 %v241, %v318
  %v320 = vpop.f32.mrf.mxu0
  %v321 = vadd.f32 %v245, %v320
  %322 = vdwg.mxu0
  %v323 = vmax.f32 %v319, 0.0
  %v324 = vmax.f32 %v321, 0.0
  %v325 = vld [vmem:[%s12] sm:$0xff]
  %v326 = vld [vmem:[%s12 + $0x8] sm:$0xff]
  %v327 = vld [vmem:[%s12 + $0x10] sm:$0xff]
  %v328 = vld [vmem:[%s12 + $0x18] sm:$0xff]
  %v329 = vld [vmem:[%s12 + $0x20] sm:$0xff]
  %v330 = vld [vmem:[%s12 + $0x28] sm:$0xff]
  %v331 = vld [vmem:[%s12 + $0x30] sm:$0xff]
  %v332 = vld [vmem:[%s12 + $0x38] sm:$0xff]
  %v333 = vld [vmem:[%s12 + $0x40] sm:$0xff]
  %v334 = vld [vmem:[%s12 + $0x48] sm:$0xff]
  %v335 = vld [vmem:[%s12 + $0x50] sm:$0xff]
  %v336 = vld [vmem:[%s12 + $0x58] sm:$0xff]
  %v337 = vld [vmem:[%s12 + $0x60] sm:$0xff]
  %v338 = vld [vmem:[%s12 + $0x68] sm:$0xff]
  %v339 = vld [vmem:[%s12 + $0x70] sm:$0xff]
  %v340 = vld [vmem:[%s12 + $0x78] sm:$0xff]
  %v341 = vld [vmem:[%s12 + $0x80] sm:$0xff]
  %v342 = vld [vmem:[%s12 + $0x88] sm:$0xff]
  %v343 = vld [vmem:[%s12 + $0x90] sm:$0xff]
  %v344 = vld [vmem:[%s12 + $0x98] sm:$0xff]
  %v345 = vld [vmem:[%s12 + $0xa0] sm:$0xff]
  %v346 = vld [vmem:[%s12 + $0xa8] sm:$0xff]
  %v347 = vld [vmem:[%s12 + $0xb0] sm:$0xff]
  %v348 = vld [vmem:[%s12 + $0xb8] sm:$0xff]
  %v349 = vld [vmem:[%s13] sm:$0x1]
  %v351 = vlaneseq
  %v352 = vshrl.u32 %v351, 7
  %v353 = vsub.s32 0, %v352
  %v354 = vrot.slane %v349, %v353
  %v357 = vsel %vm248, %v324, 0
  %359 = vmatprep.subr.mxu0 0.0
  %360 = vmatpush1.msra.mxu0 %v340
  %361 = vmatprep.subr.mxu0 0.0
  %362 = vmatpush1.msra.mxu0 %v339
  %363 = vmatprep.subr.mxu0 0.0
  %364 = vmatpush1.msra.mxu0 %v338
  %365 = vmatprep.subr.mxu0 0.0
  %366 = vmatpush1.msra.mxu0 %v337
  %367 = vmatprep.subr.mxu0 0.0
  %368 = vmatpush1.msra.mxu0 %v336
  %369 = vmatprep.subr.mxu0 0.0
  %370 = vmatpush1.msra.mxu0 %v335
  %371 = vmatprep.subr.mxu0 0.0
  %372 = vmatpush1.msra.mxu0 %v334
  %373 = vmatprep.subr.mxu0 0.0
  %374 = vmatpush1.msra.mxu0 %v333
  %375 = vmatprep.subr.mxu0 0.0
  %376 = vmatpush1.msra.mxu0 %v332
  %377 = vmatprep.subr.mxu0 0.0
  %378 = vmatpush1.msra.mxu0 %v331
  %379 = vmatprep.subr.mxu0 0.0
  %380 = vmatpush1.msra.mxu0 %v330
  %381 = vmatprep.subr.mxu0 0.0
  %382 = vmatpush1.msra.mxu0 %v329
  %383 = vmatprep.subr.mxu0 0.0
  %384 = vmatpush1.msra.mxu0 %v328
  %385 = vmatprep.subr.mxu0 0.0
  %386 = vmatpush1.msra.mxu0 %v327
  %387 = vmatprep.subr.mxu0 0.0
  %388 = vmatpush1.msra.mxu0 %v326
  %389 = vmatprep.subr.mxu0 0.0
  %390 = vmatpush1.msra.mxu0 %v325
  %391 = vmatprep.subr.mxu0 0.0
  %392 = vmatpush2.msra.mxu0 0.0
  %393 = vmatprep.subr.mxu0 0.0
  %394 = vmatpush2.msra.mxu0 0.0
  %395 = vmatprep.subr.mxu0 0.0
  %396 = vmatpush2.msra.mxu0 0.0
  %397 = vmatprep.subr.mxu0 0.0
  %398 = vmatpush2.msra.mxu0 0.0
  %399 = vmatprep.subr.mxu0 0.0
  %400 = vmatpush2.msra.mxu0 0.0
  %401 = vmatprep.subr.mxu0 0.0
  %402 = vmatpush2.msra.mxu0 0.0
  %403 = vmatprep.subr.mxu0 0.0
  %404 = vmatpush2.msra.mxu0 0.0
  %405 = vmatprep.subr.mxu0 0.0
  %406 = vmatpush2.msra.mxu0 0.0
  %407 = vmatprep.subr.mxu0 0.0
  %408 = vmatpush2.msra.mxu0 %v348
  %409 = vmatprep.subr.mxu0 0.0
  %410 = vmatpush2.msra.mxu0 %v347
  %411 = vmatprep.subr.mxu0 0.0
  %412 = vmatpush2.msra.mxu0 %v346
  %413 = vmatprep.subr.mxu0 0.0
  %414 = vmatpush2.msra.mxu0 %v345
  %415 = vmatprep.subr.mxu0 0.0
  %416 = vmatpush2.msra.mxu0 %v344
  %417 = vmatprep.subr.mxu0 0.0
  %418 = vmatpush2.msra.mxu0 %v343
  %419 = vmatprep.subr.mxu0 0.0
  %420 = vmatpush2.msra.mxu0 %v342
  %421 = vmatprep.subr.mxu0 0.0
  %422 = vmatpush2.msra.mxu0 %v341
  %423 = vmatprep.mubr.f32.mxu0 %v357
  %424 = vmatmul.mubr.f32.gmra.mxu0 %v323
  %v425 = vpop.f32.mrf.mxu0
  %v426 = vadd.f32 %v354, %v425
  %v427 = vpop.f32.mrf.mxu0
  %428 = vdwg.mxu0
  %430 = vrot.lane.b32.xlu0 %v426, 112
  %v431 = vpop.permute.xlu0 %430
  %vm433 = vcmask 25600
  %434 = vst.msk [vmem:[%s15] sm:$0x3] %vm433, %v431
  %v435 = vld [vmem:[%s2] sm:$0xff]
  %v436 = vld [vmem:[%s2 + $0x8] sm:$0xff]
  %v437 = vld [vmem:[%s2 + $0x10] sm:$0xff]
  %v438 = vld [vmem:[%s2 + $0x18] sm:$0xff]
  %v439 = vld [vmem:[%s0] sm:$0xff]
  %v440 = vld [vmem:[%s0 + $0x8] sm:$0xff]
  %v441 = vld [vmem:[%s0 + $0x10] sm:$0xff]
  %v442 = vld [vmem:[%s0 + $0x18] sm:$0xff]
  %v443 = vld [vmem:[%s0 + $0x20] sm:$0xff]
  %v444 = vld [vmem:[%s0 + $0x28] sm:$0xff]
  %v445 = vld [vmem:[%s0 + $0x30] sm:$0xff]
  %v446 = vld [vmem:[%s0 + $0x38] sm:$0xff]
  %v447 = vld [vmem:[%s0 + $0x40] sm:$0xff]
  %v448 = vld [vmem:[%s0 + $0x48] sm:$0xff]
  %v449 = vld [vmem:[%s0 + $0x50] sm:$0xff]
  %v450 = vld [vmem:[%s0 + $0x58] sm:$0xff]
  %v451 = vld [vmem:[%s0 + $0x60] sm:$0xff]
  %v452 = vld [vmem:[%s0 + $0x68] sm:$0xff]
  %v453 = vld [vmem:[%s0 + $0x70] sm:$0xff]
  %v454 = vld [vmem:[%s0 + $0x78] sm:$0xff]
  %v456 = vsel %vm112, %v435, 0
  %v459 = vsel %vm112, %v436, 0
  %v462 = vsel %vm112, %v437, 0
  %v465 = vsel %vm112, %v438, 0
  %v468 = vsel %vm112, %v439, 0
  %v471 = vsel %vm112, %v440, 0
  %v474 = vsel %vm112, %v441, 0
  %v477 = vsel %vm112, %v442, 0
  %v480 = vsel %vm112, %v443, 0
  %v483 = vsel %vm112, %v444, 0
  %v486 = vsel %vm112, %v445, 0
  %v489 = vsel %vm112, %v446, 0
  %v492 = vsel %vm112, %v447, 0
  %v495 = vsel %vm112, %v448, 0
  %v498 = vsel %vm112, %v449, 0
  %v501 = vsel %vm112, %v450, 0
  %v504 = vsel %vm112, %v451, 0
  %v507 = vsel %vm112, %v452, 0
  %v510 = vsel %vm112, %v453, 0
  %v513 = vsel %vm112, %v454, 0
  %515 = vmatprep.subr.mxu0 0.0
  %516 = vmatpush1.xpose.msra.mxu0 %v513
  %517 = vmatprep.subr.mxu0 0.0
  %518 = vmatpush1.xpose.msra.mxu0 %v510
  %519 = vmatprep.subr.mxu0 0.0
  %520 = vmatpush1.xpose.msra.mxu0 %v507
  %521 = vmatprep.subr.mxu0 0.0
  %522 = vmatpush1.xpose.msra.mxu0 %v504
  %523 = vmatprep.subr.mxu0 0.0
  %524 = vmatpush1.xpose.msra.mxu0 %v501
  %525 = vmatprep.subr.mxu0 0.0
  %526 = vmatpush1.xpose.msra.mxu0 %v498
  %527 = vmatprep.subr.mxu0 0.0
  %528 = vmatpush1.xpose.msra.mxu0 %v495
  %529 = vmatprep.subr.mxu0 0.0
  %530 = vmatpush1.xpose.msra.mxu0 %v492
  %531 = vmatprep.subr.mxu0 0.0
  %532 = vmatpush1.xpose.msra.mxu0 %v489
  %533 = vmatprep.subr.mxu0 0.0
  %534 = vmatpush1.xpose.msra.mxu0 %v486
  %535 = vmatprep.subr.mxu0 0.0
  %536 = vmatpush1.xpose.msra.mxu0 %v483
  %537 = vmatprep.subr.mxu0 0.0
  %538 = vmatpush1.xpose.msra.mxu0 %v480
  %539 = vmatprep.subr.mxu0 0.0
  %540 = vmatpush1.xpose.msra.mxu0 %v477
  %541 = vmatprep.subr.mxu0 0.0
  %542 = vmatpush1.xpose.msra.mxu0 %v474
  %543 = vmatprep.subr.mxu0 0.0
  %544 = vmatpush1.xpose.msra.mxu0 %v471
  %545 = vmatprep.subr.mxu0 0.0
  %546 = vmatpush1.xpose.msra.mxu0 %v468
  %547 = vmatprep.subr.mxu0 0.0
  %548 = vmatpush2.xpose.msra.mxu0 0.0
  %549 = vmatprep.subr.mxu0 0.0
  %550 = vmatpush2.xpose.msra.mxu0 0.0
  %551 = vmatprep.subr.mxu0 0.0
  %552 = vmatpush2.xpose.msra.mxu0 0.0
  %553 = vmatprep.subr.mxu0 0.0
  %554 = vmatpush2.xpose.msra.mxu0 0.0
  %555 = vmatprep.subr.mxu0 0.0
  %556 = vmatpush2.xpose.msra.mxu0 0.0
  %557 = vmatprep.subr.mxu0 0.0
  %558 = vmatpush2.xpose.msra.mxu0 0.0
  %559 = vmatprep.subr.mxu0 0.0
  %560 = vmatpush2.xpose.msra.mxu0 0.0
  %561 = vmatprep.subr.mxu0 0.0
  %562 = vmatpush2.xpose.msra.mxu0 0.0
  %563 = vmatprep.subr.mxu0 0.0
  %564 = vmatpush2.xpose.msra.mxu0 0.0
  %565 = vmatprep.subr.mxu0 0.0
  %566 = vmatpush2.xpose.msra.mxu0 0.0
  %567 = vmatprep.subr.mxu0 0.0
  %568 = vmatpush2.xpose.msra.mxu0 0.0
  %569 = vmatprep.subr.mxu0 0.0
  %570 = vmatpush2.xpose.msra.mxu0 0.0
  %571 = vmatprep.subr.mxu0 0.0
  %572 = vmatpush2.xpose.msra.mxu0 0.0
  %573 = vmatprep.subr.mxu0 0.0
  %574 = vmatpush2.xpose.msra.mxu0 0.0
  %575 = vmatprep.subr.mxu0 0.0
  %576 = vmatpush2.xpose.msra.mxu0 0.0
  %577 = vmatprep.subr.mxu0 0.0
  %578 = vmatpush2.xpose.msra.mxu0 0.0
  %579 = vmatprep.mubr.f32.mxu0 0.0
  %580 = vmatmul.mubr.f32.gmra.mxu0 %v456
  %v581 = vpop.f32.mrf.mxu0
  %v582 = vadd.f32 0.0, %v581
  %v583 = vpop.f32.mrf.mxu0
  %584 = vmatprep.mubr.f32.mxu0 0.0
  %585 = vmatmul.mubr.f32.gmra.mxu0 %v459
  %v586 = vpop.f32.mrf.mxu0
  %v587 = vadd.f32 0.0, %v586
  %v588 = vpop.f32.mrf.mxu0
  %589 = vmatprep.mubr.f32.mxu0 0.0
  %590 = vmatmul.mubr.f32.gmra.mxu0 %v462
  %v591 = vpop.f32.mrf.mxu0
  %v592 = vadd.f32 0.0, %v591
  %v593 = vpop.f32.mrf.mxu0
  %594 = vmatprep.mubr.f32.mxu0 0.0
  %595 = vmatmul.mubr.f32.gmra.mxu0 %v465
  %v596 = vpop.f32.mrf.mxu0
  %v597 = vadd.f32 0.0, %v596
  %v598 = vpop.f32.mrf.mxu0
  %599 = vdwg.mxu0
  %v600 = vld [vmem:[%s3] sm:$0xff]
  %602 = vset.pattern.permute.xlu0 0
  %603 = vperm.xlu0 %602, %v600
  %v604 = vpop.permute.xlu0 %603
  %v606 = vadd.f32 %v582, %v604
  %v607 = vadd.f32 %v587, %v604
  %v608 = vadd.f32 %v592, %v604
  %v609 = vadd.f32 %v597, %v604
  %v610 = vrot.slane %v606, 4
  %v611 = vadd.f32 %v606, %v610
  %v612 = vrot.slane %v611, 2
  %v613 = vadd.f32 %v611, %v612
  %v614 = vrot.slane %v613, 1
  %v615 = vadd.f32 %v613, %v614
  %v616 = vrot.slane %v607, 4
  %v617 = vadd.f32 %v607, %v616
  %v618 = vrot.slane %v617, 2
  %v619 = vadd.f32 %v617, %v618
  %v620 = vrot.slane %v619, 1
  %v621 = vadd.f32 %v619, %v620
  %v622 = vrot.slane %v608, 4
  %v623 = vadd.f32 %v608, %v622
  %v624 = vrot.slane %v623, 2
  %v625 = vadd.f32 %v623, %v624
  %v626 = vrot.slane %v625, 1
  %v627 = vadd.f32 %v625, %v626
  %v628 = vrot.slane %v609, 4
  %v629 = vadd.f32 %v609, %v628
  %v630 = vrot.slane %v629, 2
  %v631 = vadd.f32 %v629, %v630
  %v632 = vrot.slane %v631, 1
  %v633 = vadd.f32 %v631, %v632
  %v634 = vrcp.pop 8.0
  %v635 = vmul.f32 %v615, %v634
  %v636 = vmul.f32 %v621, %v634
  %v637 = vmul.f32 %v627, %v634
  %v638 = vmul.f32 %v633, %v634
  %v639 = vsub.f32 %v606, %v635
  %v640 = vsub.f32 %v607, %v636
  %v641 = vsub.f32 %v608, %v637
  %v642 = vsub.f32 %v609, %v638
  %v643 = vmul.f32 %v639, %v639
  %v644 = vmul.f32 %v640, %v640
  %v645 = vmul.f32 %v641, %v641
  %v646 = vmul.f32 %v642, %v642
  %v647 = vrot.slane %v643, 4
  %v648 = vadd.f32 %v643, %v647
  %v649 = vrot.slane %v648, 2
  %v650 = vadd.f32 %v648, %v649
  %v651 = vrot.slane %v650, 1
  %v652 = vadd.f32 %v650, %v651
  %v653 = vrot.slane %v644, 4
  %v654 = vadd.f32 %v644, %v653
  %v655 = vrot.slane %v654, 2
  %v656 = vadd.f32 %v654, %v655
  %v657 = vrot.slane %v656, 1
  %v658 = vadd.f32 %v656, %v657
  %v659 = vrot.slane %v645, 4
  %v660 = vadd.f32 %v645, %v659
  %v661 = vrot.slane %v660, 2
  %v662 = vadd.f32 %v660, %v661
  %v663 = vrot.slane %v662, 1
  %v664 = vadd.f32 %v662, %v663
  %v665 = vrot.slane %v646, 4
  %v666 = vadd.f32 %v646, %v665
  %v667 = vrot.slane %v666, 2
  %v668 = vadd.f32 %v666, %v667
  %v669 = vrot.slane %v668, 1
  %v670 = vadd.f32 %v668, %v669
  %v671 = vmul.f32 %v652, %v634
  %v672 = vmul.f32 %v658, %v634
  %v673 = vmul.f32 %v664, %v634
  %v674 = vmul.f32 %v670, %v634
  %v675 = vadd.f32 %v671, 1e-06
  %v676 = vadd.f32 %v672, 1e-06
  %v677 = vadd.f32 %v673, 1e-06
  %v678 = vadd.f32 %v674, 1e-06
  %v679 = vrsqrt.pop %v675
  %v680 = vrsqrt.pop %v676
  %v681 = vrsqrt.pop %v677
  %v682 = vrsqrt.pop %v678
  %v683 = vmul.f32 %v639, %v679
  %v684 = vmul.f32 %v640, %v680
  %v685 = vmul.f32 %v641, %v681
  %v686 = vmul.f32 %v642, %v682
  %v687 = vld [vmem:[%s4] sm:$0xff]
  %689 = vset.pattern.permute.xlu0 0
  %690 = vperm.xlu0 %689, %v687
  %v691 = vpop.permute.xlu0 %690
  %v693 = vmul.f32 %v683, %v691
  %v694 = vmul.f32 %v684, %v691
  %v695 = vmul.f32 %v685, %v691
  %v696 = vmul.f32 %v686, %v691
  %v697 = vld [vmem:[%s5] sm:$0xff]
  %699 = vset.pattern.permute.xlu0 0
  %700 = vperm.xlu0 %699, %v697
  %v701 = vpop.permute.xlu0 %700
  %v703 = vadd.f32 %v693, %v701
  %v704 = vadd.f32 %v694, %v701
  %v705 = vadd.f32 %v695, %v701
  %v706 = vadd.f32 %v696, %v701
  %v707 = vmul.f32 %v703, 0.5
  %v708 = vmul.f32 %v704, 0.5
  %v709 = vmul.f32 %v705, 0.5
  %v710 = vmul.f32 %v706, 0.5
  %v711 = vmul.f32 %v703, 0.044715
  %v712 = vmul.f32 %v704, 0.044715
  %v713 = vmul.f32 %v705, 0.044715
  %v714 = vmul.f32 %v706, 0.044715
  %v715 = vmul.f32 %v711, %v703
  %v716 = vmul.f32 %v712, %v704
  %v717 = vmul.f32 %v713, %v705
  %v718 = vmul.f32 %v714, %v706
  %v719 = vmul.f32 %v715, %v703
  %v720 = vmul.f32 %v716, %v704
  %v721 = vmul.f32 %v717, %v705
  %v722 = vmul.f32 %v718, %v706
  %v723 = vadd.f32 %v703, %v719
  %v724 = vadd.f32 %v704, %v720
  %v725 = vadd.f32 %v705, %v721
  %v726 = vadd.f32 %v706, %v722
  %v727 = vmul.f32 %v723, 0.7978846
  %v728 = vmul.f32 %v724, 0.7978846
  %v729 = vmul.f32 %v725, 0.7978846
  %v730 = vmul.f32 %v726, 0.7978846
  %v731 = vtanh.pop %v727
  %v732 = vtanh.pop %v728
  %v733 = vtanh.pop %v729
  %v734 = vtanh.pop %v730
  %v735 = vadd.f32 %v731, 1.0
  %v736 = vadd.f32 %v732, 1.0
  %v737 = vadd.f32 %v733, 1.0
  %v738 = vadd.f32 %v734, 1.0
  %v739 = vmul.f32 %v707, %v735
  %v740 = vmul.f32 %v708, %v736
  %v741 = vmul.f32 %v709, %v737
  %v742 = vmul.f32 %v710, %v738
  %v743 = vld [vmem:[%s6] sm:$0xff]
  %v744 = vld [vmem:[%s6 + $0x8] sm:$0xff]
  %v745 = vld [vmem:[%s6 + $0x10] sm:$0xff]
  %v746 = vld [vmem:[%s6 + $0x18] sm:$0xff]
  %v747 = vld [vmem:[%s6 + $0x20] sm:$0xff]
  %v748 = vld [vmem:[%s6 + $0x28] sm:$0xff]
  %v749 = vld [vmem:[%s6 + $0x30] sm:$0xff]
  %v750 = vld [vmem:[%s6 + $0x38] sm:$0xff]
  %v751 = vld [vmem:[%s7] sm:$0xff]
  %v752 = vld [vmem:[%s7 + $0x8] sm:$0xff]
  %v753 = vld [vmem:[%s7 + $0x10] sm:$0xff]
  %v754 = vld [vmem:[%s7 + $0x18] sm:$0xff]
  %v755 = vld [vmem:[%s7 + $0x20] sm:$0xff]
  %v756 = vld [vmem:[%s7 + $0x28] sm:$0xff]
  %v757 = vld [vmem:[%s7 + $0x30] sm:$0xff]
  %v758 = vld [vmem:[%s7 + $0x38] sm:$0xff]
  %760 = vset.pattern.permute.xlu0 0
  %761 = vperm.xlu0 %760, %v751
  %v762 = vpop.permute.xlu0 %761
  %765 = vset.pattern.permute.xlu0 0
  %766 = vperm.xlu0 %765, %v752
  %v767 = vpop.permute.xlu0 %766
  %770 = vset.pattern.permute.xlu0 0
  %771 = vperm.xlu0 %770, %v753
  %v772 = vpop.permute.xlu0 %771
  %775 = vset.pattern.permute.xlu0 0
  %776 = vperm.xlu0 %775, %v754
  %v777 = vpop.permute.xlu0 %776
  %780 = vset.pattern.permute.xlu0 0
  %781 = vperm.xlu0 %780, %v755
  %v782 = vpop.permute.xlu0 %781
  %785 = vset.pattern.permute.xlu0 0
  %786 = vperm.xlu0 %785, %v756
  %v787 = vpop.permute.xlu0 %786
  %790 = vset.pattern.permute.xlu0 0
  %791 = vperm.xlu0 %790, %v757
  %v792 = vpop.permute.xlu0 %791
  %795 = vset.pattern.permute.xlu0 0
  %796 = vperm.xlu0 %795, %v758
  %v797 = vpop.permute.xlu0 %796
  %v800 = vsel %vm112, %v743, 0
  %v803 = vsel %vm112, %v744, 0
  %v806 = vsel %vm112, %v745, 0
  %v809 = vsel %vm112, %v746, 0
  %v812 = vsel %vm112, %v747, 0
  %v815 = vsel %vm112, %v748, 0
  %v818 = vsel %vm112, %v749, 0
  %v821 = vsel %vm112, %v750, 0
  %823 = vmatprep.subr.mxu0 0.0
  %824 = vmatpush1.msra.mxu0 0.0
  %825 = vmatprep.subr.mxu0 0.0
  %826 = vmatpush1.msra.mxu0 0.0
  %827 = vmatprep.subr.mxu0 0.0
  %828 = vmatpush1.msra.mxu0 0.0
  %829 = vmatprep.subr.mxu0 0.0
  %830 = vmatpush1.msra.mxu0 0.0
  %831 = vmatprep.subr.mxu0 0.0
  %832 = vmatpush1.msra.mxu0 0.0
  %833 = vmatprep.subr.mxu0 0.0
  %834 = vmatpush1.msra.mxu0 0.0
  %835 = vmatprep.subr.mxu0 0.0
  %836 = vmatpush1.msra.mxu0 0.0
  %837 = vmatprep.subr.mxu0 0.0
  %838 = vmatpush1.msra.mxu0 0.0
  %839 = vmatprep.subr.mxu0 0.0
  %840 = vmatpush1.msra.mxu0 0.0
  %841 = vmatprep.subr.mxu0 0.0
  %842 = vmatpush1.msra.mxu0 0.0
  %843 = vmatprep.subr.mxu0 0.0
  %844 = vmatpush1.msra.mxu0 0.0
  %845 = vmatprep.subr.mxu0 0.0
  %846 = vmatpush1.msra.mxu0 0.0
  %847 = vmatprep.subr.mxu0 0.0
  %848 = vmatpush1.msra.mxu0 %v742
  %849 = vmatprep.subr.mxu0 0.0
  %850 = vmatpush1.msra.mxu0 %v741
  %851 = vmatprep.subr.mxu0 0.0
  %852 = vmatpush1.msra.mxu0 %v740
  %853 = vmatprep.subr.mxu0 0.0
  %854 = vmatpush1.msra.mxu0 %v739
  %855 = vmatprep.subr.mxu0 0.0
  %856 = vmatpush2.msra.mxu0 0.0
  %857 = vmatprep.subr.mxu0 0.0
  %858 = vmatpush2.msra.mxu0 0.0
  %859 = vmatprep.subr.mxu0 0.0
  %860 = vmatpush2.msra.mxu0 0.0
  %861 = vmatprep.subr.mxu0 0.0
  %862 = vmatpush2.msra.mxu0 0.0
  %863 = vmatprep.subr.mxu0 0.0
  %864 = vmatpush2.msra.mxu0 0.0
  %865 = vmatprep.subr.mxu0 0.0
  %866 = vmatpush2.msra.mxu0 0.0
  %867 = vmatprep.subr.mxu0 0.0
  %868 = vmatpush2.msra.mxu0 0.0
  %869 = vmatprep.subr.mxu0 0.0
  %870 = vmatpush2.msra.mxu0 0.0
  %871 = vmatprep.subr.mxu0 0.0
  %872 = vmatpush2.msra.mxu0 0.0
  %873 = vmatprep.subr.mxu0 0.0
  %874 = vmatpush2.msra.mxu0 0.0
  %875 = vmatprep.subr.mxu0 0.0
  %876 = vmatpush2.msra.mxu0 0.0
  %877 = vmatprep.subr.mxu0 0.0
  %878 = vmatpush2.msra.mxu0 0.0
  %879 = vmatprep.subr.mxu0 0.0
  %880 = vmatpush2.msra.mxu0 0.0
  %881 = vmatprep.subr.mxu0 0.0
  %882 = vmatpush2.msra.mxu0 0.0
  %883 = vmatprep.subr.mxu0 0.0
  %884 = vmatpush2.msra.mxu0 0.0
  %885 = vmatprep.subr.mxu0 0.0
  %886 = vmatpush2.msra.mxu0 0.0
  %887 = vmatprep.mubr.f32.mxu0 0.0
  %888 = vmatmul.mubr.f32.gmra.mxu0 %v800
  %v889 = vpop.f32.mrf.mxu0
  %v890 = vadd.f32 %v762, %v889
  %v891 = vpop.f32.mrf.mxu0
  %892 = vmatprep.mubr.f32.mxu0 0.0
  %893 = vmatmul.mubr.f32.gmra.mxu0 %v803
  %v894 = vpop.f32.mrf.mxu0
  %v895 = vadd.f32 %v767, %v894
  %v896 = vpop.f32.mrf.mxu0
  %897 = vmatprep.mubr.f32.mxu0 0.0
  %898 = vmatmul.mubr.f32.gmra.mxu0 %v806
  %v899 = vpop.f32.mrf.mxu0
  %v900 = vadd.f32 %v772, %v899
  %v901 = vpop.f32.mrf.mxu0
  %902 = vmatprep.mubr.f32.mxu0 0.0
  %903 = vmatmul.mubr.f32.gmra.mxu0 %v809
  %v904 = vpop.f32.mrf.mxu0
  %v905 = vadd.f32 %v777, %v904
  %v906 = vpop.f32.mrf.mxu0
  %907 = vmatprep.mubr.f32.mxu0 0.0
  %908 = vmatmul.mubr.f32.gmra.mxu0 %v812
  %v909 = vpop.f32.mrf.mxu0
  %v910 = vadd.f32 %v782, %v909
  %v911 = vpop.f32.mrf.mxu0
  %912 = vmatprep.mubr.f32.mxu0 0.0
  %913 = vmatmul.mubr.f32.gmra.mxu0 %v815
  %v914 = vpop.f32.mrf.mxu0
  %v915 = vadd.f32 %v787, %v914
  %v916 = vpop.f32.mrf.mxu0
  %917 = vmatprep.mubr.f32.mxu0 0.0
  %918 = vmatmul.mubr.f32.gmra.mxu0 %v818
  %v919 = vpop.f32.mrf.mxu0
  %v920 = vadd.f32 %v792, %v919
  %v921 = vpop.f32.mrf.mxu0
  %922 = vmatprep.mubr.f32.mxu0 0.0
  %923 = vmatmul.mubr.f32.gmra.mxu0 %v821
  %v924 = vpop.f32.mrf.mxu0
  %v925 = vadd.f32 %v797, %v924
  %v926 = vpop.f32.mrf.mxu0
  %927 = vdwg.mxu0
  %v928 = vmul.f32 %v890, 0.5
  %v929 = vmul.f32 %v895, 0.5
  %v930 = vmul.f32 %v900, 0.5
  %v931 = vmul.f32 %v905, 0.5
  %v932 = vmul.f32 %v910, 0.5
  %v933 = vmul.f32 %v915, 0.5
  %v934 = vmul.f32 %v920, 0.5
  %v935 = vmul.f32 %v925, 0.5
  %v936 = vmul.f32 %v890, 0.044715
  %v937 = vmul.f32 %v895, 0.044715
  %v938 = vmul.f32 %v900, 0.044715
  %v939 = vmul.f32 %v905, 0.044715
  %v940 = vmul.f32 %v910, 0.044715
  %v941 = vmul.f32 %v915, 0.044715
  %v942 = vmul.f32 %v920, 0.044715
  %v943 = vmul.f32 %v925, 0.044715
  %v944 = vmul.f32 %v936, %v890
  %v945 = vmul.f32 %v937, %v895
  %v946 = vmul.f32 %v938, %v900
  %v947 = vmul.f32 %v939, %v905
  %v948 = vmul.f32 %v940, %v910
  %v949 = vmul.f32 %v941, %v915
  %v950 = vmul.f32 %v942, %v920
  %v951 = vmul.f32 %v943, %v925
  %v952 = vmul.f32 %v944, %v890
  %v953 = vmul.f32 %v945, %v895
  %v954 = vmul.f32 %v946, %v900
  %v955 = vmul.f32 %v947, %v905
  %v956 = vmul.f32 %v948, %v910
  %v957 = vmul.f32 %v949, %v915
  %v958 = vmul.f32 %v950, %v920
  %v959 = vmul.f32 %v951, %v925
  %v960 = vadd.f32 %v890, %v952
  %v961 = vadd.f32 %v895, %v953
  %v962 = vadd.f32 %v900, %v954
  %v963 = vadd.f32 %v905, %v955
  %v964 = vadd.f32 %v910, %v956
  %v965 = vadd.f32 %v915, %v957
  %v966 = vadd.f32 %v920, %v958
  %v967 = vadd.f32 %v925, %v959
  %v968 = vmul.f32 %v960, 0.7978846
  %v969 = vmul.f32 %v961, 0.7978846
  %v970 = vmul.f32 %v962, 0.7978846
  %v971 = vmul.f32 %v963, 0.7978846
  %v972 = vmul.f32 %v964, 0.7978846
  %v973 = vmul.f32 %v965, 0.7978846
  %v974 = vmul.f32 %v966, 0.7978846
  %v975 = vmul.f32 %v967, 0.7978846
  %v976 = vtanh.pop %v968
  %v977 = vtanh.pop %v969
  %v978 = vtanh.pop %v970
  %v979 = vtanh.pop %v971
  %v980 = vtanh.pop %v972
  %v981 = vtanh.pop %v973
  %v982 = vtanh.pop %v974
  %v983 = vtanh.pop %v975
  %v984 = vadd.f32 %v976, 1.0
  %v985 = vadd.f32 %v977, 1.0
  %v986 = vadd.f32 %v978, 1.0
  %v987 = vadd.f32 %v979, 1.0
  %v988 = vadd.f32 %v980, 1.0
  %v989 = vadd.f32 %v981, 1.0
  %v990 = vadd.f32 %v982, 1.0
  %v991 = vadd.f32 %v983, 1.0
  %v992 = vmul.f32 %v928, %v984
  %v993 = vmul.f32 %v929, %v985
  %v994 = vmul.f32 %v930, %v986
  %v995 = vmul.f32 %v931, %v987
  %v996 = vmul.f32 %v932, %v988
  %v997 = vmul.f32 %v933, %v989
  %v998 = vmul.f32 %v934, %v990
  %v999 = vmul.f32 %v935, %v991
  %vm1000 = vcmask 519168
  %1001 = vst.msk [vmem:[#allocation2] sm:$0xf] %vm1000, %v992
  %1003 = vrot.lane.b32.xlu0 %v992, 64
  %v1004 = vpop.permute.xlu0 %1003
  %s1006 = scalar_lea.vmem [#allocation2], 32
  %1007 = vst.msk [vmem:[%s1006] sm:$0xf] %vm1000, %v1004
  %v1008 = vcombine.high %v992, %v992
  %1009 = vrot.lane.b32.xlu0 %v1008, 64
  %v1010 = vpop.permute.xlu0 %1009
  %vm1012 = vcmask 1043968
  %1013 = vst.msk [vmem:[#allocation2] sm:$0xf] %vm1012, %v1010
  %1015 = vst.msk [vmem:[%s1006] sm:$0xf] %vm1012, %v1008
  %1016 = vst.msk [vmem:[#allocation2 + $0x4] sm:$0xf] %vm1000, %v993
  %1018 = vrot.lane.b32.xlu0 %v993, 64
  %v1019 = vpop.permute.xlu0 %1018
  %1021 = vst.msk [vmem:[%s1006 + $0x4] sm:$0xf] %vm1000, %v1019
  %v1022 = vcombine.high %v993, %v993
  %1023 = vrot.lane.b32.xlu0 %v1022, 64
  %v1024 = vpop.permute.xlu0 %1023
  %1026 = vst.msk [vmem:[#allocation2 + $0x4] sm:$0xf] %vm1012, %v1024
  %1028 = vst.msk [vmem:[%s1006 + $0x4] sm:$0xf] %vm1012, %v1022
  %1029 = vst.msk [vmem:[#allocation2 + $0x8] sm:$0xf] %vm1000, %v994
  %1031 = vrot.lane.b32.xlu0 %v994, 64
  %v1032 = vpop.permute.xlu0 %1031
  %1034 = vst.msk [vmem:[%s1006 + $0x8] sm:$0xf] %vm1000, %v1032
  %v1035 = vcombine.high %v994, %v994
  %1036 = vrot.lane.b32.xlu0 %v1035, 64
  %v1037 = vpop.permute.xlu0 %1036
  %1039 = vst.msk [vmem:[#allocation2 + $0x8] sm:$0xf] %vm1012, %v1037
  %1041 = vst.msk [vmem:[%s1006 + $0x8] sm:$0xf] %vm1012, %v1035
  %1042 = vst.msk [vmem:[#allocation2 + $0xc] sm:$0xf] %vm1000, %v995
  %1044 = vrot.lane.b32.xlu0 %v995, 64
  %v1045 = vpop.permute.xlu0 %1044
  %1047 = vst.msk [vmem:[%s1006 + $0xc] sm:$0xf] %vm1000, %v1045
  %v1048 = vcombine.high %v995, %v995
  %1049 = vrot.lane.b32.xlu0 %v1048, 64
  %v1050 = vpop.permute.xlu0 %1049
  %1052 = vst.msk [vmem:[#allocation2 + $0xc] sm:$0xf] %vm1012, %v1050
  %1054 = vst.msk [vmem:[%s1006 + $0xc] sm:$0xf] %vm1012, %v1048
  %1055 = vst.msk [vmem:[#allocation2 + $0x10] sm:$0xf] %vm1000, %v996
  %1057 = vrot.lane.b32.xlu0 %v996, 64
  %v1058 = vpop.permute.xlu0 %1057
  %1060 = vst.msk [vmem:[%s1006 + $0x10] sm:$0xf] %vm1000, %v1058
  %v1061 = vcombine.high %v996, %v996
  %1062 = vrot.lane.b32.xlu0 %v1061, 64
  %v1063 = vpop.permute.xlu0 %1062
  %1065 = vst.msk [vmem:[#allocation2 + $0x10] sm:$0xf] %vm1012, %v1063
  %1067 = vst.msk [vmem:[%s1006 + $0x10] sm:$0xf] %vm1012, %v1061
  %1068 = vst.msk [vmem:[#allocation2 + $0x14] sm:$0xf] %vm1000, %v997
  %1070 = vrot.lane.b32.xlu0 %v997, 64
  %v1071 = vpop.permute.xlu0 %1070
  %1073 = vst.msk [vmem:[%s1006 + $0x14] sm:$0xf] %vm1000, %v1071
  %v1074 = vcombine.high %v997, %v997
  %1075 = vrot.lane.b32.xlu0 %v1074, 64
  %v1076 = vpop.permute.xlu0 %1075
  %1078 = vst.msk [vmem:[#allocation2 + $0x14] sm:$0xf] %vm1012, %v1076
  %1080 = vst.msk [vmem:[%s1006 + $0x14] sm:$0xf] %vm1012, %v1074
  %1081 = vst.msk [vmem:[#allocation2 + $0x18] sm:$0xf] %vm1000, %v998
  %1083 = vrot.lane.b32.xlu0 %v998, 64
  %v1084 = vpop.permute.xlu0 %1083
  %1086 = vst.msk [vmem:[%s1006 + $0x18] sm:$0xf] %vm1000, %v1084
  %v1087 = vcombine.high %v998, %v998
  %1088 = vrot.lane.b32.xlu0 %v1087, 64
  %v1089 = vpop.permute.xlu0 %1088
  %1091 = vst.msk [vmem:[#allocation2 + $0x18] sm:$0xf] %vm1012, %v1089
  %1093 = vst.msk [vmem:[%s1006 + $0x18] sm:$0xf] %vm1012, %v1087
  %1094 = vst.msk [vmem:[#allocation2 + $0x1c] sm:$0xf] %vm1000, %v999
  %1096 = vrot.lane.b32.xlu0 %v999, 64
  %v1097 = vpop.permute.xlu0 %1096
  %1099 = vst.msk [vmem:[%s1006 + $0x1c] sm:$0xf] %vm1000, %v1097
  %v1100 = vcombine.high %v999, %v999
  %1101 = vrot.lane.b32.xlu0 %v1100, 64
  %v1102 = vpop.permute.xlu0 %1101
  %1104 = vst.msk [vmem:[#allocation2 + $0x1c] sm:$0xf] %vm1012, %v1102
  %1106 = vst.msk [vmem:[%s1006 + $0x1c] sm:$0xf] %vm1012, %v1100
  %v1107 = vrot.slane %v426, 7
  %1108 = vrot.lane.b32.xlu0 %v1107, 124
  %v1109 = vpop.permute.xlu0 %1108
  %v1111 = vrot.slane %v426, 6
  %1112 = vrot.lane.b32.xlu0 %v1111, 120
  %v1113 = vpop.permute.xlu0 %1112
  %v1115 = vrot.slane %v426, 5
  %1116 = vrot.lane.b32.xlu0 %v1115, 116
  %v1117 = vpop.permute.xlu0 %1116
  %vm1119 = vcmask 1040384
  %v1120 = vsel %vm1119, %v426, %v1109
  %vm1121 = vcmask 1041408
  %v1122 = vsel %vm1121, %v1120, %v1113
  %vm1123 = vcmask 1042432
  %v1124 = vsel %vm1123, %v1122, %v1117
  %v1125 = vld [vmem:[#allocation2] sm:$0xff]
  %v1126 = vld [vmem:[#allocation2 + $0x8] sm:$0xff]
  %v1127 = vld [vmem:[#allocation2 + $0x10] sm:$0xff]
  %v1128 = vld [vmem:[#allocation2 + $0x18] sm:$0xff]
  %v1133 = vcombine.high %v1125, %v1125
  %v1134 = vcombine.high %v1126, %v1126
  %v1135 = vcombine.high %v1127, %v1127
  %v1136 = vcombine.high %v1128, %v1128
  %vm1137 = vcmask 31744
  %v1139 = vsel %vm1137, %v1124, 0
  %vm1141 = vcmask 1043456
  %v1142 = vsel %vm1141, %v1125, 0
  %v1144 = vsel %vm1141, %v1133, 0
  %v1146 = vsel %vm1141, %v1126, 0
  %v1148 = vsel %vm1141, %v1134, 0
  %v1150 = vsel %vm1141, %v1127, 0
  %v1152 = vsel %vm1141, %v1135, 0
  %v1154 = vsel %vm1141, %v1128, 0
  %v1156 = vsel %vm1141, %v1136, 0
  %1158 = vmatprep.subr.mxu0 0.0
  %1159 = vmatpush1.msra.mxu0 0.0
  %1160 = vmatprep.subr.mxu0 0.0
  %1161 = vmatpush1.msra.mxu0 0.0
  %1162 = vmatprep.subr.mxu0 0.0
  %1163 = vmatpush1.msra.mxu0 0.0
  %1164 = vmatprep.subr.mxu0 0.0
  %1165 = vmatpush1.msra.mxu0 0.0
  %1166 = vmatprep.subr.mxu0 0.0
  %1167 = vmatpush1.msra.mxu0 0.0
  %1168 = vmatprep.subr.mxu0 0.0
  %1169 = vmatpush1.msra.mxu0 0.0
  %1170 = vmatprep.subr.mxu0 0.0
  %1171 = vmatpush1.msra.mxu0 0.0
  %1172 = vmatprep.subr.mxu0 0.0
  %1173 = vmatpush1.msra.mxu0 0.0
  %1174 = vmatprep.subr.mxu0 0.0
  %1175 = vmatpush1.msra.mxu0 0.0
  %1176 = vmatprep.subr.mxu0 0.0
  %1177 = vmatpush1.msra.mxu0 0.0
  %1178 = vmatprep.subr.mxu0 0.0
  %1179 = vmatpush1.msra.mxu0 0.0
  %1180 = vmatprep.subr.mxu0 0.0
  %1181 = vmatpush1.msra.mxu0 0.0
  %1182 = vmatprep.subr.mxu0 0.0
  %1183 = vmatpush1.msra.mxu0 0.0
  %1184 = vmatprep.subr.mxu0 0.0
  %1185 = vmatpush1.msra.mxu0 0.0
  %1186 = vmatprep.subr.mxu0 0.0
  %1187 = vmatpush1.msra.mxu0 0.0
  %1188 = vmatprep.subr.mxu0 %v1144
  %1189 = vmatpush1.msra.mxu0 %v1142
  %1190 = vmatprep.subr.mxu0 0.0
  %1191 = vmatpush2.msra.mxu0 0.0
  %1192 = vmatprep.subr.mxu0 0.0
  %1193 = vmatpush2.msra.mxu0 0.0
  %1194 = vmatprep.subr.mxu0 0.0
  %1195 = vmatpush2.msra.mxu0 0.0
  %1196 = vmatprep.subr.mxu0 0.0
  %1197 = vmatpush2.msra.mxu0 0.0
  %1198 = vmatprep.subr.mxu0 0.0
  %1199 = vmatpush2.msra.mxu0 0.0
  %1200 = vmatprep.subr.mxu0 0.0
  %1201 = vmatpush2.msra.mxu0 0.0
  %1202 = vmatprep.subr.mxu0 0.0
  %1203 = vmatpush2.msra.mxu0 0.0
  %1204 = vmatprep.subr.mxu0 0.0
  %1205 = vmatpush2.msra.mxu0 0.0
  %1206 = vmatprep.subr.mxu0 0.0
  %1207 = vmatpush2.msra.mxu0 0.0
  %1208 = vmatprep.subr.mxu0 0.0
  %1209 = vmatpush2.msra.mxu0 0.0
  %1210 = vmatprep.subr.mxu0 0.0
  %1211 = vmatpush2.msra.mxu0 0.0
  %1212 = vmatprep.subr.mxu0 0.0
  %1213 = vmatpush2.msra.mxu0 0.0
  %1214 = vmatprep.subr.mxu0 0.0
  %1215 = vmatpush2.msra.mxu0 0.0
  %1216 = vmatprep.subr.mxu0 0.0
  %1217 = vmatpush2.msra.mxu0 0.0
  %1218 = vmatprep.subr.mxu0 0.0
  %1219 = vmatpush2.msra.mxu0 0.0
  %1220 = vmatprep.subr.mxu0 0.0
  %1221 = vmatpush2.msra.mxu0 0.0
  %1222 = vmatprep.mubr.f32.mxu0 0.0
  %1223 = vmatmul.mubr.f32.gmra.mxu0 %v1139
  %v1224 = vpop.f32.mrf.mxu0
  %v1225 = vadd.f32 0.0, %v1224
  %v1226 = vpop.f32.mrf.mxu0
  %v1227 = vadd.f32 0.0, %v1226
  %1228 = vdwg.mxu0
  %1229 = vmatprep.subr.mxu0 0.0
  %1230 = vmatpush1.msra.mxu0 0.0
  %1231 = vmatprep.subr.mxu0 0.0
  %1232 = vmatpush1.msra.mxu0 0.0
  %1233 = vmatprep.subr.mxu0 0.0
  %1234 = vmatpush1.msra.mxu0 0.0
  %1235 = vmatprep.subr.mxu0 0.0
  %1236 = vmatpush1.msra.mxu0 0.0
  %1237 = vmatprep.subr.mxu0 0.0
  %1238 = vmatpush1.msra.mxu0 0.0
  %1239 = vmatprep.subr.mxu0 0.0
  %1240 = vmatpush1.msra.mxu0 0.0
  %1241 = vmatprep.subr.mxu0 0.0
  %1242 = vmatpush1.msra.mxu0 0.0
  %1243 = vmatprep.subr.mxu0 0.0
  %1244 = vmatpush1.msra.mxu0 0.0
  %1245 = vmatprep.subr.mxu0 0.0
  %1246 = vmatpush1.msra.mxu0 0.0
  %1247 = vmatprep.subr.mxu0 0.0
  %1248 = vmatpush1.msra.mxu0 0.0
  %1249 = vmatprep.subr.mxu0 0.0
  %1250 = vmatpush1.msra.mxu0 0.0
  %1251 = vmatprep.subr.mxu0 0.0
  %1252 = vmatpush1.msra.mxu0 0.0
  %1253 = vmatprep.subr.mxu0 0.0
  %1254 = vmatpush1.msra.mxu0 0.0
  %1255 = vmatprep.subr.mxu0 0.0
  %1256 = vmatpush1.msra.mxu0 0.0
  %1257 = vmatprep.subr.mxu0 0.0
  %1258 = vmatpush1.msra.mxu0 0.0
  %1259 = vmatprep.subr.mxu0 %v1148
  %1260 = vmatpush1.msra.mxu0 %v1146
  %1261 = vmatprep.subr.mxu0 0.0
  %1262 = vmatpush2.msra.mxu0 0.0
  %1263 = vmatprep.subr.mxu0 0.0
  %1264 = vmatpush2.msra.mxu0 0.0
  %1265 = vmatprep.subr.mxu0 0.0
  %1266 = vmatpush2.msra.mxu0 0.0
  %1267 = vmatprep.subr.mxu0 0.0
  %1268 = vmatpush2.msra.mxu0 0.0
  %1269 = vmatprep.subr.mxu0 0.0
  %1270 = vmatpush2.msra.mxu0 0.0
  %1271 = vmatprep.subr.mxu0 0.0
  %1272 = vmatpush2.msra.mxu0 0.0
  %1273 = vmatprep.subr.mxu0 0.0
  %1274 = vmatpush2.msra.mxu0 0.0
  %1275 = vmatprep.subr.mxu0 0.0
  %1276 = vmatpush2.msra.mxu0 0.0
  %1277 = vmatprep.subr.mxu0 0.0
  %1278 = vmatpush2.msra.mxu0 0.0
  %1279 = vmatprep.subr.mxu0 0.0
  %1280 = vmatpush2.msra.mxu0 0.0
  %1281 = vmatprep.subr.mxu0 0.0
  %1282 = vmatpush2.msra.mxu0 0.0
  %1283 = vmatprep.subr.mxu0 0.0
  %1284 = vmatpush2.msra.mxu0 0.0
  %1285 = vmatprep.subr.mxu0 0.0
  %1286 = vmatpush2.msra.mxu0 0.0
  %1287 = vmatprep.subr.mxu0 0.0
  %1288 = vmatpush2.msra.mxu0 0.0
  %1289 = vmatprep.subr.mxu0 0.0
  %1290 = vmatpush2.msra.mxu0 0.0
  %1291 = vmatprep.subr.mxu0 0.0
  %1292 = vmatpush2.msra.mxu0 0.0
  %1293 = vmatprep.mubr.f32.mxu0 0.0
  %1294 = vmatmul.mubr.f32.gmra.mxu0 %v1139
  %v1295 = vpop.f32.mrf.mxu0
  %v1296 = vadd.f32 0.0, %v1295
  %v1297 = vpop.f32.mrf.mxu0
  %v1298 = vadd.f32 0.0, %v1297
  %1299 = vdwg.mxu0
  %1300 = vmatprep.subr.mxu0 0.0
  %1301 = vmatpush1.msra.mxu0 0.0
  %1302 = vmatprep.subr.mxu0 0.0
  %1303 = vmatpush1.msra.mxu0 0.0
  %1304 = vmatprep.subr.mxu0 0.0
  %1305 = vmatpush1.msra.mxu0 0.0
  %1306 = vmatprep.subr.mxu0 0.0
  %1307 = vmatpush1.msra.mxu0 0.0
  %1308 = vmatprep.subr.mxu0 0.0
  %1309 = vmatpush1.msra.mxu0 0.0
  %1310 = vmatprep.subr.mxu0 0.0
  %1311 = vmatpush1.msra.mxu0 0.0
  %1312 = vmatprep.subr.mxu0 0.0
  %1313 = vmatpush1.msra.mxu0 0.0
  %1314 = vmatprep.subr.mxu0 0.0
  %1315 = vmatpush1.msra.mxu0 0.0
  %1316 = vmatprep.subr.mxu0 0.0
  %1317 = vmatpush1.msra.mxu0 0.0
  %1318 = vmatprep.subr.mxu0 0.0
  %1319 = vmatpush1.msra.mxu0 0.0
  %1320 = vmatprep.subr.mxu0 0.0
  %1321 = vmatpush1.msra.mxu0 0.0
  %1322 = vmatprep.subr.mxu0 0.0
  %1323 = vmatpush1.msra.mxu0 0.0
  %1324 = vmatprep.subr.mxu0 0.0
  %1325 = vmatpush1.msra.mxu0 0.0
  %1326 = vmatprep.subr.mxu0 0.0
  %1327 = vmatpush1.msra.mxu0 0.0
  %1328 = vmatprep.subr.mxu0 0.0
  %1329 = vmatpush1.msra.mxu0 0.0
  %1330 = vmatprep.subr.mxu0 %v1152
  %1331 = vmatpush1.msra.mxu0 %v1150
  %1332 = vmatprep.subr.mxu0 0.0
  %1333 = vmatpush2.msra.mxu0 0.0
  %1334 = vmatprep.subr.mxu0 0.0
  %1335 = vmatpush2.msra.mxu0 0.0
  %1336 = vmatprep.subr.mxu0 0.0
  %1337 = vmatpush2.msra.mxu0 0.0
  %1338 = vmatprep.subr.mxu0 0.0
  %1339 = vmatpush2.msra.mxu0 0.0
  %1340 = vmatprep.subr.mxu0 0.0
  %1341 = vmatpush2.msra.mxu0 0.0
  %1342 = vmatprep.subr.mxu0 0.0
  %1343 = vmatpush2.msra.mxu0 0.0
  %1344 = vmatprep.subr.mxu0 0.0
  %1345 = vmatpush2.msra.mxu0 0.0
  %1346 = vmatprep.subr.mxu0 0.0
  %1347 = vmatpush2.msra.mxu0 0.0
  %1348 = vmatprep.subr.mxu0 0.0
  %1349 = vmatpush2.msra.mxu0 0.0
  %1350 = vmatprep.subr.mxu0 0.0
  %1351 = vmatpush2.msra.mxu0 0.0
  %1352 = vmatprep.subr.mxu0 0.0
  %1353 = vmatpush2.msra.mxu0 0.0
  %1354 = vmatprep.subr.mxu0 0.0
  %1355 = vmatpush2.msra.mxu0 0.0
  %1356 = vmatprep.subr.mxu0 0.0
  %1357 = vmatpush2.msra.mxu0 0.0
  %1358 = vmatprep.subr.mxu0 0.0
  %1359 = vmatpush2.msra.mxu0 0.0
  %1360 = vmatprep.subr.mxu0 0.0
  %1361 = vmatpush2.msra.mxu0 0.0
  %1362 = vmatprep.subr.mxu0 0.0
  %1363 = vmatpush2.msra.mxu0 0.0
  %1364 = vmatprep.mubr.f32.mxu0 0.0
  %1365 = vmatmul.mubr.f32.gmra.mxu0 %v1139
  %v1366 = vpop.f32.mrf.mxu0
  %v1367 = vadd.f32 0.0, %v1366
  %v1368 = vpop.f32.mrf.mxu0
  %v1369 = vadd.f32 0.0, %v1368
  %1370 = vdwg.mxu0
  %1371 = vmatprep.subr.mxu0 0.0
  %1372 = vmatpush1.msra.mxu0 0.0
  %1373 = vmatprep.subr.mxu0 0.0
  %1374 = vmatpush1.msra.mxu0 0.0
  %1375 = vmatprep.subr.mxu0 0.0
  %1376 = vmatpush1.msra.mxu0 0.0
  %1377 = vmatprep.subr.mxu0 0.0
  %1378 = vmatpush1.msra.mxu0 0.0
  %1379 = vmatprep.subr.mxu0 0.0
  %1380 = vmatpush1.msra.mxu0 0.0
  %1381 = vmatprep.subr.mxu0 0.0
  %1382 = vmatpush1.msra.mxu0 0.0
  %1383 = vmatprep.subr.mxu0 0.0
  %1384 = vmatpush1.msra.mxu0 0.0
  %1385 = vmatprep.subr.mxu0 0.0
  %1386 = vmatpush1.msra.mxu0 0.0
  %1387 = vmatprep.subr.mxu0 0.0
  %1388 = vmatpush1.msra.mxu0 0.0
  %1389 = vmatprep.subr.mxu0 0.0
  %1390 = vmatpush1.msra.mxu0 0.0
  %1391 = vmatprep.subr.mxu0 0.0
  %1392 = vmatpush1.msra.mxu0 0.0
  %1393 = vmatprep.subr.mxu0 0.0
  %1394 = vmatpush1.msra.mxu0 0.0
  %1395 = vmatprep.subr.mxu0 0.0
  %1396 = vmatpush1.msra.mxu0 0.0
  %1397 = vmatprep.subr.mxu0 0.0
  %1398 = vmatpush1.msra.mxu0 0.0
  %1399 = vmatprep.subr.mxu0 0.0
  %1400 = vmatpush1.msra.mxu0 0.0
  %1401 = vmatprep.subr.mxu0 %v1156
  %1402 = vmatpush1.msra.mxu0 %v1154
  %1403 = vmatprep.subr.mxu0 0.0
  %1404 = vmatpush2.msra.mxu0 0.0
  %1405 = vmatprep.subr.mxu0 0.0
  %1406 = vmatpush2.msra.mxu0 0.0
  %1407 = vmatprep.subr.mxu0 0.0
  %1408 = vmatpush2.msra.mxu0 0.0
  %1409 = vmatprep.subr.mxu0 0.0
  %1410 = vmatpush2.msra.mxu0 0.0
  %1411 = vmatprep.subr.mxu0 0.0
  %1412 = vmatpush2.msra.mxu0 0.0
  %1413 = vmatprep.subr.mxu0 0.0
  %1414 = vmatpush2.msra.mxu0 0.0
  %1415 = vmatprep.subr.mxu0 0.0
  %1416 = vmatpush2.msra.mxu0 0.0
  %1417 = vmatprep.subr.mxu0 0.0
  %1418 = vmatpush2.msra.mxu0 0.0
  %1419 = vmatprep.subr.mxu0 0.0
  %1420 = vmatpush2.msra.mxu0 0.0
  %1421 = vmatprep.subr.mxu0 0.0
  %1422 = vmatpush2.msra.mxu0 0.0
  %1423 = vmatprep.subr.mxu0 0.0
  %1424 = vmatpush2.msra.mxu0 0.0
  %1425 = vmatprep.subr.mxu0 0.0
  %1426 = vmatpush2.msra.mxu0 0.0
  %1427 = vmatprep.subr.mxu0 0.0
  %1428 = vmatpush2.msra.mxu0 0.0
  %1429 = vmatprep.subr.mxu0 0.0
  %1430 = vmatpush2.msra.mxu0 0.0
  %1431 = vmatprep.subr.mxu0 0.0
  %1432 = vmatpush2.msra.mxu0 0.0
  %1433 = vmatprep.subr.mxu0 0.0
  %1434 = vmatpush2.msra.mxu0 0.0
  %1435 = vmatprep.mubr.f32.mxu0 0.0
  %1436 = vmatmul.mubr.f32.gmra.mxu0 %v1139
  %v1437 = vpop.f32.mrf.mxu0
  %v1438 = vadd.f32 0.0, %v1437
  %v1439 = vpop.f32.mrf.mxu0
  %v1440 = vadd.f32 0.0, %v1439
  %1441 = vdwg.mxu0
  %v1450 = vcombine.low %v1225, %v1227
  %v1451 = vcombine.low %v1296, %v1298
  %v1452 = vcombine.low %v1367, %v1369
  %v1453 = vcombine.low %v1438, %v1440
  %1458 = vst [vmem:[%s14] sm:$0xff] %v1450
  %1459 = vst [vmem:[%s14 + $0x8] sm:$0xff] %v1451
  %1460 = vst [vmem:[%s14 + $0x10] sm:$0xff] %v1452
  %1461 = vst [vmem:[%s14 + $0x18] sm:$0xff] %v1453
  %v1462 = vrot.slane %v426, 1
  %1464 = vrot.lane.b32.xlu0 %v426, 124
  %v1465 = vpop.permute.xlu0 %1464
  %1467 = vrot.lane.b32.xlu0 %v1107, 120
  %v1468 = vpop.permute.xlu0 %1467
  %1470 = vrot.lane.b32.xlu0 %v1111, 116
  %v1471 = vpop.permute.xlu0 %1470
  %v1473 = vsel %vm1119, %v1462, %v1465
  %v1474 = vsel %vm1121, %v1473, %v1468
  %v1475 = vsel %vm1123, %v1474, %v1471
  %v1476 = vld [vmem:[%s1006] sm:$0xff]
  %v1477 = vld [vmem:[%s1006 + $0x8] sm:$0xff]
  %v1478 = vld [vmem:[%s1006 + $0x10] sm:$0xff]
  %v1479 = vld [vmem:[%s1006 + $0x18] sm:$0xff]
  %v1484 = vcombine.high %v1476, %v1476
  %v1485 = vcombine.high %v1477, %v1477
  %v1486 = vcombine.high %v1478, %v1478
  %v1487 = vcombine.high %v1479, %v1479
  %v1489 = vsel %vm1137, %v1475, 0
  %v1491 = vsel %vm1141, %v1476, 0
  %v1493 = vsel %vm1141, %v1484, 0
  %v1495 = vsel %vm1141, %v1477, 0
  %v1497 = vsel %vm1141, %v1485, 0
  %v1499 = vsel %vm1141, %v1478, 0
  %v1501 = vsel %vm1141, %v1486, 0
  %v1503 = vsel %vm1141, %v1479, 0
  %v1505 = vsel %vm1141, %v1487, 0
  %1507 = vmatprep.subr.mxu0 0.0
  %1508 = vmatpush1.msra.mxu0 0.0
  %1509 = vmatprep.subr.mxu0 0.0
  %1510 = vmatpush1.msra.mxu0 0.0
  %1511 = vmatprep.subr.mxu0 0.0
  %1512 = vmatpush1.msra.mxu0 0.0
  %1513 = vmatprep.subr.mxu0 0.0
  %1514 = vmatpush1.msra.mxu0 0.0
  %1515 = vmatprep.subr.mxu0 0.0
  %1516 = vmatpush1.msra.mxu0 0.0
  %1517 = vmatprep.subr.mxu0 0.0
  %1518 = vmatpush1.msra.mxu0 0.0
  %1519 = vmatprep.subr.mxu0 0.0
  %1520 = vmatpush1.msra.mxu0 0.0
  %1521 = vmatprep.subr.mxu0 0.0
  %1522 = vmatpush1.msra.mxu0 0.0
  %1523 = vmatprep.subr.mxu0 0.0
  %1524 = vmatpush1.msra.mxu0 0.0
  %1525 = vmatprep.subr.mxu0 0.0
  %1526 = vmatpush1.msra.mxu0 0.0
  %1527 = vmatprep.subr.mxu0 0.0
  %1528 = vmatpush1.msra.mxu0 0.0
  %1529 = vmatprep.subr.mxu0 0.0
  %1530 = vmatpush1.msra.mxu0 0.0
  %1531 = vmatprep.subr.mxu0 0.0
  %1532 = vmatpush1.msra.mxu0 0.0
  %1533 = vmatprep.subr.mxu0 0.0
  %1534 = vmatpush1.msra.mxu0 0.0
  %1535 = vmatprep.subr.mxu0 0.0
  %1536 = vmatpush1.msra.mxu0 0.0
  %1537 = vmatprep.subr.mxu0 %v1493
  %1538 = vmatpush1.msra.mxu0 %v1491
  %1539 = vmatprep.subr.mxu0 0.0
  %1540 = vmatpush2.msra.mxu0 0.0
  %1541 = vmatprep.subr.mxu0 0.0
  %1542 = vmatpush2.msra.mxu0 0.0
  %1543 = vmatprep.subr.mxu0 0.0
  %1544 = vmatpush2.msra.mxu0 0.0
  %1545 = vmatprep.subr.mxu0 0.0
  %1546 = vmatpush2.msra.mxu0 0.0
  %1547 = vmatprep.subr.mxu0 0.0
  %1548 = vmatpush2.msra.mxu0 0.0
  %1549 = vmatprep.subr.mxu0 0.0
  %1550 = vmatpush2.msra.mxu0 0.0
  %1551 = vmatprep.subr.mxu0 0.0
  %1552 = vmatpush2.msra.mxu0 0.0
  %1553 = vmatprep.subr.mxu0 0.0
  %1554 = vmatpush2.msra.mxu0 0.0
  %1555 = vmatprep.subr.mxu0 0.0
  %1556 = vmatpush2.msra.mxu0 0.0
  %1557 = vmatprep.subr.mxu0 0.0
  %1558 = vmatpush2.msra.mxu0 0.0
  %1559 = vmatprep.subr.mxu0 0.0
  %1560 = vmatpush2.msra.mxu0 0.0
  %1561 = vmatprep.subr.mxu0 0.0
  %1562 = vmatpush2.msra.mxu0 0.0
  %1563 = vmatprep.subr.mxu0 0.0
  %1564 = vmatpush2.msra.mxu0 0.0
  %1565 = vmatprep.subr.mxu0 0.0
  %1566 = vmatpush2.msra.mxu0 0.0
  %1567 = vmatprep.subr.mxu0 0.0
  %1568 = vmatpush2.msra.mxu0 0.0
  %1569 = vmatprep.subr.mxu0 0.0
  %1570 = vmatpush2.msra.mxu0 0.0
  %1571 = vmatprep.mubr.f32.mxu0 0.0
  %1572 = vmatmul.mubr.f32.gmra.mxu0 %v1489
  %v1573 = vpop.f32.mrf.mxu0
  %v1574 = vadd.f32 0.0, %v1573
  %v1575 = vpop.f32.mrf.mxu0
  %v1576 = vadd.f32 0.0, %v1575
  %1577 = vdwg.mxu0
  %1578 = vmatprep.subr.mxu0 0.0
  %1579 = vmatpush1.msra.mxu0 0.0
  %1580 = vmatprep.subr.mxu0 0.0
  %1581 = vmatpush1.msra.mxu0 0.0
  %1582 = vmatprep.subr.mxu0 0.0
  %1583 = vmatpush1.msra.mxu0 0.0
  %1584 = vmatprep.subr.mxu0 0.0
  %1585 = vmatpush1.msra.mxu0 0.0
  %1586 = vmatprep.subr.mxu0 0.0
  %1587 = vmatpush1.msra.mxu0 0.0
  %1588 = vmatprep.subr.mxu0 0.0
  %1589 = vmatpush1.msra.mxu0 0.0
  %1590 = vmatprep.subr.mxu0 0.0
  %1591 = vmatpush1.msra.mxu0 0.0
  %1592 = vmatprep.subr.mxu0 0.0
  %1593 = vmatpush1.msra.mxu0 0.0
  %1594 = vmatprep.subr.mxu0 0.0
  %1595 = vmatpush1.msra.mxu0 0.0
  %1596 = vmatprep.subr.mxu0 0.0
  %1597 = vmatpush1.msra.mxu0 0.0
  %1598 = vmatprep.subr.mxu0 0.0
  %1599 = vmatpush1.msra.mxu0 0.0
  %1600 = vmatprep.subr.mxu0 0.0
  %1601 = vmatpush1.msra.mxu0 0.0
  %1602 = vmatprep.subr.mxu0 0.0
  %1603 = vmatpush1.msra.mxu0 0.0
  %1604 = vmatprep.subr.mxu0 0.0
  %1605 = vmatpush1.msra.mxu0 0.0
  %1606 = vmatprep.subr.mxu0 0.0
  %1607 = vmatpush1.msra.mxu0 0.0
  %1608 = vmatprep.subr.mxu0 %v1497
  %1609 = vmatpush1.msra.mxu0 %v1495
  %1610 = vmatprep.subr.mxu0 0.0
  %1611 = vmatpush2.msra.mxu0 0.0
  %1612 = vmatprep.subr.mxu0 0.0
  %1613 = vmatpush2.msra.mxu0 0.0
  %1614 = vmatprep.subr.mxu0 0.0
  %1615 = vmatpush2.msra.mxu0 0.0
  %1616 = vmatprep.subr.mxu0 0.0
  %1617 = vmatpush2.msra.mxu0 0.0
  %1618 = vmatprep.subr.mxu0 0.0
  %1619 = vmatpush2.msra.mxu0 0.0
  %1620 = vmatprep.subr.mxu0 0.0
  %1621 = vmatpush2.msra.mxu0 0.0
  %1622 = vmatprep.subr.mxu0 0.0
  %1623 = vmatpush2.msra.mxu0 0.0
  %1624 = vmatprep.subr.mxu0 0.0
  %1625 = vmatpush2.msra.mxu0 0.0
  %1626 = vmatprep.subr.mxu0 0.0
  %1627 = vmatpush2.msra.mxu0 0.0
  %1628 = vmatprep.subr.mxu0 0.0
  %1629 = vmatpush2.msra.mxu0 0.0
  %1630 = vmatprep.subr.mxu0 0.0
  %1631 = vmatpush2.msra.mxu0 0.0
  %1632 = vmatprep.subr.mxu0 0.0
  %1633 = vmatpush2.msra.mxu0 0.0
  %1634 = vmatprep.subr.mxu0 0.0
  %1635 = vmatpush2.msra.mxu0 0.0
  %1636 = vmatprep.subr.mxu0 0.0
  %1637 = vmatpush2.msra.mxu0 0.0
  %1638 = vmatprep.subr.mxu0 0.0
  %1639 = vmatpush2.msra.mxu0 0.0
  %1640 = vmatprep.subr.mxu0 0.0
  %1641 = vmatpush2.msra.mxu0 0.0
  %1642 = vmatprep.mubr.f32.mxu0 0.0
  %1643 = vmatmul.mubr.f32.gmra.mxu0 %v1489
  %v1644 = vpop.f32.mrf.mxu0
  %v1645 = vadd.f32 0.0, %v1644
  %v1646 = vpop.f32.mrf.mxu0
  %v1647 = vadd.f32 0.0, %v1646
  %1648 = vdwg.mxu0
  %1649 = vmatprep.subr.mxu0 0.0
  %1650 = vmatpush1.msra.mxu0 0.0
  %1651 = vmatprep.subr.mxu0 0.0
  %1652 = vmatpush1.msra.mxu0 0.0
  %1653 = vmatprep.subr.mxu0 0.0
  %1654 = vmatpush1.msra.mxu0 0.0
  %1655 = vmatprep.subr.mxu0 0.0
  %1656 = vmatpush1.msra.mxu0 0.0
  %1657 = vmatprep.subr.mxu0 0.0
  %1658 = vmatpush1.msra.mxu0 0.0
  %1659 = vmatprep.subr.mxu0 0.0
  %1660 = vmatpush1.msra.mxu0 0.0
  %1661 = vmatprep.subr.mxu0 0.0
  %1662 = vmatpush1.msra.mxu0 0.0
  %1663 = vmatprep.subr.mxu0 0.0
  %1664 = vmatpush1.msra.mxu0 0.0
  %1665 = vmatprep.subr.mxu0 0.0
  %1666 = vmatpush1.msra.mxu0 0.0
  %1667 = vmatprep.subr.mxu0 0.0
  %1668 = vmatpush1.msra.mxu0 0.0
  %1669 = vmatprep.subr.mxu0 0.0
  %1670 = vmatpush1.msra.mxu0 0.0
  %1671 = vmatprep.subr.mxu0 0.0
  %1672 = vmatpush1.msra.mxu0 0.0
  %1673 = vmatprep.subr.mxu0 0.0
  %1674 = vmatpush1.msra.mxu0 0.0
  %1675 = vmatprep.subr.mxu0 0.0
  %1676 = vmatpush1.msra.mxu0 0.0
  %1677 = vmatprep.subr.mxu0 0.0
  %1678 = vmatpush1.msra.mxu0 0.0
  %1679 = vmatprep.subr.mxu0 %v1501
  %1680 = vmatpush1.msra.mxu0 %v1499
  %1681 = vmatprep.subr.mxu0 0.0
  %1682 = vmatpush2.msra.mxu0 0.0
  %1683 = vmatprep.subr.mxu0 0.0
  %1684 = vmatpush2.msra.mxu0 0.0
  %1685 = vmatprep.subr.mxu0 0.0
  %1686 = vmatpush2.msra.mxu0 0.0
  %1687 = vmatprep.subr.mxu0 0.0
  %1688 = vmatpush2.msra.mxu0 0.0
  %1689 = vmatprep.subr.mxu0 0.0
  %1690 = vmatpush2.msra.mxu0 0.0
  %1691 = vmatprep.subr.mxu0 0.0
  %1692 = vmatpush2.msra.mxu0 0.0
  %1693 = vmatprep.subr.mxu0 0.0
  %1694 = vmatpush2.msra.mxu0 0.0
  %1695 = vmatprep.subr.mxu0 0.0
  %1696 = vmatpush2.msra.mxu0 0.0
  %1697 = vmatprep.subr.mxu0 0.0
  %1698 = vmatpush2.msra.mxu0 0.0
  %1699 = vmatprep.subr.mxu0 0.0
  %1700 = vmatpush2.msra.mxu0 0.0
  %1701 = vmatprep.subr.mxu0 0.0
  %1702 = vmatpush2.msra.mxu0 0.0
  %1703 = vmatprep.subr.mxu0 0.0
  %1704 = vmatpush2.msra.mxu0 0.0
  %1705 = vmatprep.subr.mxu0 0.0
  %1706 = vmatpush2.msra.mxu0 0.0
  %1707 = vmatprep.subr.mxu0 0.0
  %1708 = vmatpush2.msra.mxu0 0.0
  %1709 = vmatprep.subr.mxu0 0.0
  %1710 = vmatpush2.msra.mxu0 0.0
  %1711 = vmatprep.subr.mxu0 0.0
  %1712 = vmatpush2.msra.mxu0 0.0
  %1713 = vmatprep.mubr.f32.mxu0 0.0
  %1714 = vmatmul.mubr.f32.gmra.mxu0 %v1489
  %v1715 = vpop.f32.mrf.mxu0
  %v1716 = vadd.f32 0.0, %v1715
  %v1717 = vpop.f32.mrf.mxu0
  %v1718 = vadd.f32 0.0, %v1717
  %1719 = vdwg.mxu0
  %1720 = vmatprep.subr.mxu0 0.0
  %1721 = vmatpush1.msra.mxu0 0.0
  %1722 = vmatprep.subr.mxu0 0.0
  %1723 = vmatpush1.msra.mxu0 0.0
  %1724 = vmatprep.subr.mxu0 0.0
  %1725 = vmatpush1.msra.mxu0 0.0
  %1726 = vmatprep.subr.mxu0 0.0
  %1727 = vmatpush1.msra.mxu0 0.0
  %1728 = vmatprep.subr.mxu0 0.0
  %1729 = vmatpush1.msra.mxu0 0.0
  %1730 = vmatprep.subr.mxu0 0.0
  %1731 = vmatpush1.msra.mxu0 0.0
  %1732 = vmatprep.subr.mxu0 0.0
  %1733 = vmatpush1.msra.mxu0 0.0
  %1734 = vmatprep.subr.mxu0 0.0
  %1735 = vmatpush1.msra.mxu0 0.0
  %1736 = vmatprep.subr.mxu0 0.0
  %1737 = vmatpush1.msra.mxu0 0.0
  %1738 = vmatprep.subr.mxu0 0.0
  %1739 = vmatpush1.msra.mxu0 0.0
  %1740 = vmatprep.subr.mxu0 0.0
  %1741 = vmatpush1.msra.mxu0 0.0
  %1742 = vmatprep.subr.mxu0 0.0
  %1743 = vmatpush1.msra.mxu0 0.0
  %1744 = vmatprep.subr.mxu0 0.0
  %1745 = vmatpush1.msra.mxu0 0.0
  %1746 = vmatprep.subr.mxu0 0.0
  %1747 = vmatpush1.msra.mxu0 0.0
  %1748 = vmatprep.subr.mxu0 0.0
  %1749 = vmatpush1.msra.mxu0 0.0
  %1750 = vmatprep.subr.mxu0 %v1505
  %1751 = vmatpush1.msra.mxu0 %v1503
  %1752 = vmatprep.subr.mxu0 0.0
  %1753 = vmatpush2.msra.mxu0 0.0
  %1754 = vmatprep.subr.mxu0 0.0
  %1755 = vmatpush2.msra.mxu0 0.0
  %1756 = vmatprep.subr.mxu0 0.0
  %1757 = vmatpush2.msra.mxu0 0.0
  %1758 = vmatprep.subr.mxu0 0.0
  %1759 = vmatpush2.msra.mxu0 0.0
  %1760 = vmatprep.subr.mxu0 0.0
  %1761 = vmatpush2.msra.mxu0 0.0
  %1762 = vmatprep.subr.mxu0 0.0
  %1763 = vmatpush2.msra.mxu0 0.0
  %1764 = vmatprep.subr.mxu0 0.0
  %1765 = vmatpush2.msra.mxu0 0.0
  %1766 = vmatprep.subr.mxu0 0.0
  %1767 = vmatpush2.msra.mxu0 0.0
  %1768 = vmatprep.subr.mxu0 0.0
  %1769 = vmatpush2.msra.mxu0 0.0
  %1770 = vmatprep.subr.mxu0 0.0
  %1771 = vmatpush2.msra.mxu0 0.0
  %1772 = vmatprep.subr.mxu0 0.0
  %1773 = vmatpush2.msra.mxu0 0.0
  %1774 = vmatprep.subr.mxu0 0.0
  %1775 = vmatpush2.msra.mxu0 0.0
  %1776 = vmatprep.subr.mxu0 0.0
  %1777 = vmatpush2.msra.mxu0 0.0
  %1778 = vmatprep.subr.mxu0 0.0
  %1779 = vmatpush2.msra.mxu0 0.0
  %1780 = vmatprep.subr.mxu0 0.0
  %1781 = vmatpush2.msra.mxu0 0.0
  %1782 = vmatprep.subr.mxu0 0.0
  %1783 = vmatpush2.msra.mxu0 0.0
  %1784 = vmatprep.mubr.f32.mxu0 0.0
  %1785 = vmatmul.mubr.f32.gmra.mxu0 %v1489
  %v1786 = vpop.f32.mrf.mxu0
  %v1787 = vadd.f32 0.0, %v1786
  %v1788 = vpop.f32.mrf.mxu0
  %v1789 = vadd.f32 0.0, %v1788
  %1790 = vdwg.mxu0
  %v1799 = vcombine.low %v1574, %v1576
  %v1800 = vcombine.low %v1645, %v1647
  %v1801 = vcombine.low %v1716, %v1718
  %v1802 = vcombine.low %v1787, %v1789
  %s1807 = scalar_lea.vmem %s14, 32
  %1808 = vst [vmem:[%s1807] sm:$0xff] %v1799
  %1809 = vst [vmem:[%s1807 + $0x8] sm:$0xff] %v1800
  %1810 = vst [vmem:[%s1807 + $0x10] sm:$0xff] %v1801
  %1811 = vst [vmem:[%s1807 + $0x18] sm:$0xff] %v1802
  // Predicated region
  $region58: #{mask_decoder_forward.1} parent=0 // pred_check
    _
  $region59: #{mask_decoder_forward.1} parent=0 // pred_check_branch
    %1813 = sbr.rel (0) target = $region61
  $region60: #{mask_decoder_forward.1} parent=0 // pred_region
    _
  $region61: #{mask_decoder_forward.1} parent=0 // pred_fallthru
    _
  // Predicated region
  $region62: #{mask_decoder_forward.1} parent=0 // pred_check
    _
  $region63: #{mask_decoder_forward.1} parent=0 // pred_check_branch
    %1815 = sbr.rel (0) target = $region65
  $region64: #{mask_decoder_forward.1} parent=0 // pred_region
    _
  $region65: #{mask_decoder_forward.1} parent=0 // pred_fallthru
    _
  // Predicated region
  $region66: #{mask_decoder_forward.1} parent=0 // pred_check
    _
  $region67: #{mask_decoder_forward.1} parent=0 // pred_check_branch
    %1817 = sbr.rel (0) target = $region69
  $region68: #{mask_decoder_forward.1} parent=0 // pred_region
    _
  $region69: #{mask_decoder_forward.1} parent=0 // pred_fallthru
    _
  // Predicated region
  $region70: #{mask_decoder_forward.1} parent=0 // pred_check
    _
  $region71: #{mask_decoder_forward.1} parent=0 // pred_check_branch
    %1819 = sbr.rel (0) target = $region73
  $region72: #{mask_decoder_forward.1} parent=0 // pred_region
    _
  $region73: #{mask_decoder_forward.1} parent=0 // pred_fallthru
    _

</llo_original>
